<compile_context>
chip_gen: v7x
topology: tpu7x:2x2x1
jax: 0.10.0
libtpu: 0.0.40
codegen_flags: <defaults>
</compile_context>

<pallas_src>
import functools

import jax
import jax.numpy as jnp
import numpy as np
from jax import lax
from jax.experimental import pallas as pl
from jax.experimental.pallas import tpu as pltpu


# ---------------------------------------------------------------------------
# Fused kernel: conv1(+leaky) -> conv2(+leaky) -> linear, all in VMEM.
# ---------------------------------------------------------------------------
def _tinycnn_kernel(p1_ref, w1_ref, b1_ref, sel_ref, w2_ref, b2_ref,
                    wl_ref, bl_ref, o_ref, *, batch, n_classes):
    f32 = jnp.float32

    # ---- conv1 as matmul on host-built patches, + bias + leaky_relu ------
    y1 = jnp.dot(p1_ref[...], w1_ref[...], preferred_element_type=f32)
    y1 = y1 + b1_ref[...]
    y1 = jnp.where(y1 >= 0, y1, 0.01 * y1)            # (B*64, 32), rows (b, ih, iw)

    # ---- conv2: 3x3 / stride-2 / pad-1 patch gather via ONE selection dot
    m2 = batch * 16                                    # layer-2 output rows (oh, ow, b)
    # taps[t*m2 + p, ci] = y1[row selected by tap t for output position p, ci]
    # (zero-padded taps are all-zero rows of sel).  One MXU call for the gather.
    taps = jnp.dot(sel_ref[...], y1, preferred_element_type=f32)   # (9*m2, 32)
    w2 = w2_ref[...]                                   # (288, 16), rows (kh, kw, ci)
    acc2 = jnp.zeros((m2, w2.shape[-1]), f32)
    for t in range(9):                                 # 9 taps, unrolled; 8-aligned slices
        acc2 = acc2 + jnp.dot(taps[t * m2:(t + 1) * m2, :],
                              w2[t * 32:(t + 1) * 32, :],
                              preferred_element_type=f32)
    y2 = acc2 + b2_ref[...]
    y2 = jnp.where(y2 >= 0, y2, 0.01 * y2)             # (B*16, 16), rows (oh, ow, b)

    # ---- linear: NCHW flatten folded into 16 accumulating dots -----------
    wl = wl_ref[...]                                   # (256, NP) lane-padded
    acc = jnp.zeros((batch, wl.shape[-1]), f32)
    for s in range(16):                                # s = oh*4 + ow, unrolled
        acc = acc + jnp.dot(y2[s * batch:(s + 1) * batch, :],
                            wl[s * 16:(s + 1) * 16, :],
                            preferred_element_type=f32)
    out = acc + bl_ref[...]
    o_ref[...] = out[:, :n_classes].astype(o_ref.dtype)


# ---------------------------------------------------------------------------
# Host-side constant: 0/1 selection matrix encoding the conv2 patch gather
# (including its zero padding).  Depends only on the static batch size.
# ---------------------------------------------------------------------------
def _build_sel2(batch):
    m1 = batch * 64                                    # y1 rows: b*64 + ih*8 + iw
    m2 = batch * 16                                    # y2 rows: (oh*4 + ow)*B + b
    sel = np.zeros((9 * m2, m1), np.float32)
    for kh in range(3):
        for kw in range(3):
            t = kh * 3 + kw
            for oh in range(4):
                for ow in range(4):
                    ih = 2 * oh + kh - 1
                    iw = 2 * ow + kw - 1
                    if 0 <= ih < 8 and 0 <= iw < 8:
                        for b in range(batch):
                            p = (oh * 4 + ow) * batch + b
                            sel[t * m2 + p, b * 64 + ih * 8 + iw] = 1.0
    return sel


# ---------------------------------------------------------------------------
# Forward pass (Pallas-backed).  Host side only repacks weights and does the
# (tiny) input im2col; everything else runs inside the single fused kernel.
# ---------------------------------------------------------------------------
def tiny_cnn_forward(x, params):
    w1, b1, w2, b2, wl, bl = params
    x = x.reshape(-1, 2, 16, 16).astype(jnp.float32)
    B = x.shape[0]
    n_classes = wl.shape[0]
    NP = ((n_classes + 127) // 128) * 128              # lane-padded linear width

    # conv1 im2col on the raw input: rows (b, oh, ow), features (ci, kh, kw).
    xp = jnp.pad(x, ((0, 0), (0, 0), (1, 1), (1, 1)))  # (B, 2, 18, 18)
    cols = [xp[:, :, kh:kh + 16:2, kw:kw + 16:2]
            for kh in range(3) for kw in range(3)]     # each (B, 2, 8, 8)
    pat = jnp.stack(cols, axis=2)                      # (B, 2, 9, 8, 8)
    p1 = pat.transpose(0, 3, 4, 1, 2).reshape(B * 64, 18)
    p1 = jnp.pad(p1, ((0, 0), (0, 32 - 18)))           # K padded 18 -> 32

    # Weight / bias repacking (matches PyTorch OIHW layouts).
    w1m = jnp.pad(w1.reshape(32, 18), ((0, 0), (0, 32 - 18))).T      # (32, 32)
    b1r = b1.reshape(1, 32)

    sel2 = jnp.asarray(_build_sel2(B))                               # (9*B*16, B*64)
    w2m = jnp.transpose(w2, (2, 3, 1, 0)).reshape(288, 16)           # rows (kh,kw,ci)
    b2r = b2.reshape(1, 16)

    # Linear weight reordered to feature order (oh, ow, co) and lane-padded.
    wlr = jnp.transpose(wl.reshape(n_classes, 16, 4, 4),
                        (0, 2, 3, 1)).reshape(n_classes, 256).T      # (256, n_classes)
    wlm = jnp.pad(wlr, ((0, 0), (0, NP - n_classes)))                # (256, NP)
    blr = jnp.pad(bl, (0, NP - n_classes)).reshape(1, NP)

    vmem = pl.BlockSpec(memory_space=pltpu.MemorySpace.VMEM)
    kernel = functools.partial(_tinycnn_kernel, batch=B, n_classes=n_classes)
    # Note: at realistic batch sizes a leading "parallel" batch grid axis would
    # let v7x's second TensorCore help; at B=2 a single grid=() call is optimal.
    return pl.pallas_call(
        kernel,
        out_shape=jax.ShapeDtypeStruct((B, n_classes), jnp.float32),
        in_specs=[vmem] * 8,
        out_specs=vmem,
    )(p1, w1m, b1r, sel2, w2m, b2r, wlm, blr)


# ---------------------------------------------------------------------------
# Pure-JAX reference (correctness check only)
# ---------------------------------------------------------------------------
def tiny_cnn_reference(x, params):
    w1, b1, w2, b2, wl, bl = params
    x = x.reshape(-1, 2, 16, 16).astype(jnp.float32)
    dn = ("NCHW", "OIHW", "NCHW")

    def leaky(v):
        return jnp.where(v >= 0, v, 0.01 * v)

    y = lax.conv_general_dilated(x, w1, (2, 2), [(1, 1), (1, 1)],
                                 dimension_numbers=dn) + b1[None, :, None, None]
    y = leaky(y)
    y = lax.conv_general_dilated(y, w2, (2, 2), [(1, 1), (1, 1)],
                                 dimension_numbers=dn) + b2[None, :, None, None]
    y = leaky(y)
    y = y.reshape(y.shape[0], 256)
    return y @ wl.T + bl


def init_params(n_classes, key):
    ks = jax.random.split(key, 6)
    w1 = jax.random.normal(ks[0], (32, 2, 3, 3), jnp.float32) * 0.1
    b1 = jax.random.normal(ks[1], (32,), jnp.float32) * 0.1
    w2 = jax.random.normal(ks[2], (16, 32, 3, 3), jnp.float32) * 0.1
    b2 = jax.random.normal(ks[3], (16,), jnp.float32) * 0.1
    wl = jax.random.normal(ks[4], (n_classes, 256), jnp.float32) * 0.1
    bl = jax.random.normal(ks[5], (n_classes,), jnp.float32) * 0.1
    return (w1, b1, w2, b2, wl, bl)


if __name__ == "__main__":
    n_classes = 10
    key = jax.random.PRNGKey(0)
    k_x, k_p = jax.random.split(key)
    params = init_params(n_classes, k_p)
    x = jax.random.normal(k_x, (2, 2, 16, 16), jnp.float32)   # B=2, NCHW

    fwd = jax.jit(tiny_cnn_forward)
    out = jax.block_until_ready(fwd(x, params))
    ref = jax.block_until_ready(jax.jit(tiny_cnn_reference)(x, params))

    assert out.shape == (2, n_classes), out.shape
    np.testing.assert_allclose(np.asarray(out), np.asarray(ref),
                               rtol=1e-3, atol=1e-3)
    print("KERNEL_OK")
</pallas_src>

<mosaic_0001>
module attributes {stable_mosaic.version = 11 : i64} {
  func.func @_tinycnn_kernel(%arg0: memref<128x32xf32, #tpu.memory_space<vmem>>, %arg1: memref<32x32xf32, #tpu.memory_space<vmem>>, %arg2: memref<1x32xf32, #tpu.memory_space<vmem>>, %arg3: memref<288x128xf32, #tpu.memory_space<vmem>>, %arg4: memref<288x16xf32, #tpu.memory_space<vmem>>, %arg5: memref<1x16xf32, #tpu.memory_space<vmem>>, %arg6: memref<256x128xf32, #tpu.memory_space<vmem>>, %arg7: memref<1x128xf32, #tpu.memory_space<vmem>>, %arg8: memref<2x10xf32, #tpu.memory_space<vmem>>) attributes {dimension_semantics = [], scalar_prefetch = 0 : i64, scratch_operands = 0 : i64, tpu.core_type = #tpu.core_type<tc>} {
    %c0 = arith.constant 0 : index
    %c0_0 = arith.constant 0 : index
    %0 = vector.load %arg0[%c0, %c0_0] : memref<128x32xf32, #tpu.memory_space<vmem>>, vector<128x32xf32>
    %c0_1 = arith.constant 0 : index
    %c0_2 = arith.constant 0 : index
    %1 = vector.load %arg1[%c0_1, %c0_2] : memref<32x32xf32, #tpu.memory_space<vmem>>, vector<32x32xf32>
    %cst = arith.constant dense<0.000000e+00> : vector<128x32xf32>
    %2 = tpu.matmul %0, %1, %cst {dimension_numbers = #tpu.dot_dimension_numbers<[1], [0], [0], [1], [0, 0, 1, 1], [], []>} : vector<128x32xf32>, vector<32x32xf32>, vector<128x32xf32> -> vector<128x32xf32>
    %c0_3 = arith.constant 0 : index
    %c0_4 = arith.constant 0 : index
    %3 = vector.load %arg2[%c0_3, %c0_4] : memref<1x32xf32, #tpu.memory_space<vmem>>, vector<1x32xf32>
    %4 = vector.broadcast %3 : vector<1x32xf32> to vector<128x32xf32>
    %5 = arith.addf %2, %4 : vector<128x32xf32>
    %cst_5 = arith.constant 0.000000e+00 : f32
    %6 = vector.broadcast %cst_5 : f32 to vector<128x32xf32>
    %7 = arith.cmpf oge, %5, %6 : vector<128x32xf32>
    %cst_6 = arith.constant 0.00999999977 : f32
    %8 = vector.broadcast %cst_6 : f32 to vector<128x32xf32>
    %9 = arith.mulf %8, %5 : vector<128x32xf32>
    %10 = arith.select %7, %5, %9 : vector<128x32xi1>, vector<128x32xf32>
    %c0_7 = arith.constant 0 : index
    %c0_8 = arith.constant 0 : index
    %11 = vector.load %arg3[%c0_7, %c0_8] : memref<288x128xf32, #tpu.memory_space<vmem>>, vector<288x128xf32>
    %cst_9 = arith.constant dense<0.000000e+00> : vector<288x32xf32>
    %12 = tpu.matmul %11, %10, %cst_9 {dimension_numbers = #tpu.dot_dimension_numbers<[1], [0], [0], [1], [0, 0, 1, 1], [], []>} : vector<288x128xf32>, vector<128x32xf32>, vector<288x32xf32> -> vector<288x32xf32>
    %c0_10 = arith.constant 0 : index
    %c0_11 = arith.constant 0 : index
    %13 = vector.load %arg4[%c0_10, %c0_11] : memref<288x16xf32, #tpu.memory_space<vmem>>, vector<288x16xf32>
    %cst_12 = arith.constant 0.000000e+00 : f32
    %14 = vector.broadcast %cst_12 : f32 to vector<32x16xf32>
    %15 = vector.extract_strided_slice %12 {offsets = [0, 0], sizes = [32, 32], strides = [1, 1]} : vector<288x32xf32> to vector<32x32xf32>
    %16 = vector.extract_strided_slice %13 {offsets = [0, 0], sizes = [32, 16], strides = [1, 1]} : vector<288x16xf32> to vector<32x16xf32>
    %cst_13 = arith.constant dense<0.000000e+00> : vector<32x16xf32>
    %17 = tpu.matmul %15, %16, %cst_13 {dimension_numbers = #tpu.dot_dimension_numbers<[1], [0], [0], [1], [0, 0, 1, 1], [], []>} : vector<32x32xf32>, vector<32x16xf32>, vector<32x16xf32> -> vector<32x16xf32>
    %18 = arith.addf %14, %17 : vector<32x16xf32>
    %19 = vector.extract_strided_slice %12 {offsets = [32, 0], sizes = [32, 32], strides = [1, 1]} : vector<288x32xf32> to vector<32x32xf32>
    %20 = vector.extract_strided_slice %13 {offsets = [32, 0], sizes = [32, 16], strides = [1, 1]} : vector<288x16xf32> to vector<32x16xf32>
    %cst_14 = arith.constant dense<0.000000e+00> : vector<32x16xf32>
    %21 = tpu.matmul %19, %20, %cst_14 {dimension_numbers = #tpu.dot_dimension_numbers<[1], [0], [0], [1], [0, 0, 1, 1], [], []>} : vector<32x32xf32>, vector<32x16xf32>, vector<32x16xf32> -> vector<32x16xf32>
    %22 = arith.addf %18, %21 : vector<32x16xf32>
    %23 = vector.extract_strided_slice %12 {offsets = [64, 0], sizes = [32, 32], strides = [1, 1]} : vector<288x32xf32> to vector<32x32xf32>
    %24 = vector.extract_strided_slice %13 {offsets = [64, 0], sizes = [32, 16], strides = [1, 1]} : vector<288x16xf32> to vector<32x16xf32>
    %cst_15 = arith.constant dense<0.000000e+00> : vector<32x16xf32>
    %25 = tpu.matmul %23, %24, %cst_15 {dimension_numbers = #tpu.dot_dimension_numbers<[1], [0], [0], [1], [0, 0, 1, 1], [], []>} : vector<32x32xf32>, vector<32x16xf32>, vector<32x16xf32> -> vector<32x16xf32>
    %26 = arith.addf %22, %25 : vector<32x16xf32>
    %27 = vector.extract_strided_slice %12 {offsets = [96, 0], sizes = [32, 32], strides = [1, 1]} : vector<288x32xf32> to vector<32x32xf32>
    %28 = vector.extract_strided_slice %13 {offsets = [96, 0], sizes = [32, 16], strides = [1, 1]} : vector<288x16xf32> to vector<32x16xf32>
    %cst_16 = arith.constant dense<0.000000e+00> : vector<32x16xf32>
    %29 = tpu.matmul %27, %28, %cst_16 {dimension_numbers = #tpu.dot_dimension_numbers<[1], [0], [0], [1], [0, 0, 1, 1], [], []>} : vector<32x32xf32>, vector<32x16xf32>, vector<32x16xf32> -> vector<32x16xf32>
    %30 = arith.addf %26, %29 : vector<32x16xf32>
    %31 = vector.extract_strided_slice %12 {offsets = [128, 0], sizes = [32, 32], strides = [1, 1]} : vector<288x32xf32> to vector<32x32xf32>
    %32 = vector.extract_strided_slice %13 {offsets = [128, 0], sizes = [32, 16], strides = [1, 1]} : vector<288x16xf32> to vector<32x16xf32>
    %cst_17 = arith.constant dense<0.000000e+00> : vector<32x16xf32>
    %33 = tpu.matmul %31, %32, %cst_17 {dimension_numbers = #tpu.dot_dimension_numbers<[1], [0], [0], [1], [0, 0, 1, 1], [], []>} : vector<32x32xf32>, vector<32x16xf32>, vector<32x16xf32> -> vector<32x16xf32>
    %34 = arith.addf %30, %33 : vector<32x16xf32>
    %35 = vector.extract_strided_slice %12 {offsets = [160, 0], sizes = [32, 32], strides = [1, 1]} : vector<288x32xf32> to vector<32x32xf32>
    %36 = vector.extract_strided_slice %13 {offsets = [160, 0], sizes = [32, 16], strides = [1, 1]} : vector<288x16xf32> to vector<32x16xf32>
    %cst_18 = arith.constant dense<0.000000e+00> : vector<32x16xf32>
    %37 = tpu.matmul %35, %36, %cst_18 {dimension_numbers = #tpu.dot_dimension_numbers<[1], [0], [0], [1], [0, 0, 1, 1], [], []>} : vector<32x32xf32>, vector<32x16xf32>, vector<32x16xf32> -> vector<32x16xf32>
    %38 = arith.addf %34, %37 : vector<32x16xf32>
    %39 = vector.extract_strided_slice %12 {offsets = [192, 0], sizes = [32, 32], strides = [1, 1]} : vector<288x32xf32> to vector<32x32xf32>
    %40 = vector.extract_strided_slice %13 {offsets = [192, 0], sizes = [32, 16], strides = [1, 1]} : vector<288x16xf32> to vector<32x16xf32>
    %cst_19 = arith.constant dense<0.000000e+00> : vector<32x16xf32>
    %41 = tpu.matmul %39, %40, %cst_19 {dimension_numbers = #tpu.dot_dimension_numbers<[1], [0], [0], [1], [0, 0, 1, 1], [], []>} : vector<32x32xf32>, vector<32x16xf32>, vector<32x16xf32> -> vector<32x16xf32>
    %42 = arith.addf %38, %41 : vector<32x16xf32>
    %43 = vector.extract_strided_slice %12 {offsets = [224, 0], sizes = [32, 32], strides = [1, 1]} : vector<288x32xf32> to vector<32x32xf32>
    %44 = vector.extract_strided_slice %13 {offsets = [224, 0], sizes = [32, 16], strides = [1, 1]} : vector<288x16xf32> to vector<32x16xf32>
    %cst_20 = arith.constant dense<0.000000e+00> : vector<32x16xf32>
    %45 = tpu.matmul %43, %44, %cst_20 {dimension_numbers = #tpu.dot_dimension_numbers<[1], [0], [0], [1], [0, 0, 1, 1], [], []>} : vector<32x32xf32>, vector<32x16xf32>, vector<32x16xf32> -> vector<32x16xf32>
    %46 = arith.addf %42, %45 : vector<32x16xf32>
    %47 = vector.extract_strided_slice %12 {offsets = [256, 0], sizes = [32, 32], strides = [1, 1]} : vector<288x32xf32> to vector<32x32xf32>
    %48 = vector.extract_strided_slice %13 {offsets = [256, 0], sizes = [32, 16], strides = [1, 1]} : vector<288x16xf32> to vector<32x16xf32>
    %cst_21 = arith.constant dense<0.000000e+00> : vector<32x16xf32>
    %49 = tpu.matmul %47, %48, %cst_21 {dimension_numbers = #tpu.dot_dimension_numbers<[1], [0], [0], [1], [0, 0, 1, 1], [], []>} : vector<32x32xf32>, vector<32x16xf32>, vector<32x16xf32> -> vector<32x16xf32>
    %50 = arith.addf %46, %49 : vector<32x16xf32>
    %c0_22 = arith.constant 0 : index
    %c0_23 = arith.constant 0 : index
    %51 = vector.load %arg5[%c0_22, %c0_23] : memref<1x16xf32, #tpu.memory_space<vmem>>, vector<1x16xf32>
    %52 = vector.broadcast %51 : vector<1x16xf32> to vector<32x16xf32>
    %53 = arith.addf %50, %52 : vector<32x16xf32>
    %cst_24 = arith.constant 0.000000e+00 : f32
    %54 = vector.broadcast %cst_24 : f32 to vector<32x16xf32>
    %55 = arith.cmpf oge, %53, %54 : vector<32x16xf32>
    %cst_25 = arith.constant 0.00999999977 : f32
    %56 = vector.broadcast %cst_25 : f32 to vector<32x16xf32>
    %57 = arith.mulf %56, %53 : vector<32x16xf32>
    %58 = arith.select %55, %53, %57 : vector<32x16xi1>, vector<32x16xf32>
    %c0_26 = arith.constant 0 : index
    %c0_27 = arith.constant 0 : index
    %59 = vector.load %arg6[%c0_26, %c0_27] : memref<256x128xf32, #tpu.memory_space<vmem>>, vector<256x128xf32>
    %cst_28 = arith.constant 0.000000e+00 : f32
    %60 = vector.broadcast %cst_28 : f32 to vector<2x128xf32>
    %61 = vector.extract_strided_slice %58 {offsets = [0, 0], sizes = [2, 16], strides = [1, 1]} : vector<32x16xf32> to vector<2x16xf32>
    %62 = vector.extract_strided_slice %59 {offsets = [0, 0], sizes = [16, 128], strides = [1, 1]} : vector<256x128xf32> to vector<16x128xf32>
    %cst_29 = arith.constant dense<0.000000e+00> : vector<2x128xf32>
    %63 = tpu.matmul %61, %62, %cst_29 {dimension_numbers = #tpu.dot_dimension_numbers<[1], [0], [0], [1], [0, 0, 1, 1], [], []>} : vector<2x16xf32>, vector<16x128xf32>, vector<2x128xf32> -> vector<2x128xf32>
    %64 = arith.addf %60, %63 : vector<2x128xf32>
    %65 = vector.extract_strided_slice %58 {offsets = [2, 0], sizes = [2, 16], strides = [1, 1]} : vector<32x16xf32> to vector<2x16xf32>
    %66 = vector.extract_strided_slice %59 {offsets = [16, 0], sizes = [16, 128], strides = [1, 1]} : vector<256x128xf32> to vector<16x128xf32>
    %cst_30 = arith.constant dense<0.000000e+00> : vector<2x128xf32>
    %67 = tpu.matmul %65, %66, %cst_30 {dimension_numbers = #tpu.dot_dimension_numbers<[1], [0], [0], [1], [0, 0, 1, 1], [], []>} : vector<2x16xf32>, vector<16x128xf32>, vector<2x128xf32> -> vector<2x128xf32>
    %68 = arith.addf %64, %67 : vector<2x128xf32>
    %69 = vector.extract_strided_slice %58 {offsets = [4, 0], sizes = [2, 16], strides = [1, 1]} : vector<32x16xf32> to vector<2x16xf32>
    %70 = vector.extract_strided_slice %59 {offsets = [32, 0], sizes = [16, 128], strides = [1, 1]} : vector<256x128xf32> to vector<16x128xf32>
    %cst_31 = arith.constant dense<0.000000e+00> : vector<2x128xf32>
    %71 = tpu.matmul %69, %70, %cst_31 {dimension_numbers = #tpu.dot_dimension_numbers<[1], [0], [0], [1], [0, 0, 1, 1], [], []>} : vector<2x16xf32>, vector<16x128xf32>, vector<2x128xf32> -> vector<2x128xf32>
    %72 = arith.addf %68, %71 : vector<2x128xf32>
    %73 = vector.extract_strided_slice %58 {offsets = [6, 0], sizes = [2, 16], strides = [1, 1]} : vector<32x16xf32> to vector<2x16xf32>
    %74 = vector.extract_strided_slice %59 {offsets = [48, 0], sizes = [16, 128], strides = [1, 1]} : vector<256x128xf32> to vector<16x128xf32>
    %cst_32 = arith.constant dense<0.000000e+00> : vector<2x128xf32>
    %75 = tpu.matmul %73, %74, %cst_32 {dimension_numbers = #tpu.dot_dimension_numbers<[1], [0], [0], [1], [0, 0, 1, 1], [], []>} : vector<2x16xf32>, vector<16x128xf32>, vector<2x128xf32> -> vector<2x128xf32>
    %76 = arith.addf %72, %75 : vector<2x128xf32>
    %77 = vector.extract_strided_slice %58 {offsets = [8, 0], sizes = [2, 16], strides = [1, 1]} : vector<32x16xf32> to vector<2x16xf32>
    %78 = vector.extract_strided_slice %59 {offsets = [64, 0], sizes = [16, 128], strides = [1, 1]} : vector<256x128xf32> to vector<16x128xf32>
    %cst_33 = arith.constant dense<0.000000e+00> : vector<2x128xf32>
    %79 = tpu.matmul %77, %78, %cst_33 {dimension_numbers = #tpu.dot_dimension_numbers<[1], [0], [0], [1], [0, 0, 1, 1], [], []>} : vector<2x16xf32>, vector<16x128xf32>, vector<2x128xf32> -> vector<2x128xf32>
    %80 = arith.addf %76, %79 : vector<2x128xf32>
    %81 = vector.extract_strided_slice %58 {offsets = [10, 0], sizes = [2, 16], strides = [1, 1]} : vector<32x16xf32> to vector<2x16xf32>
    %82 = vector.extract_strided_slice %59 {offsets = [80, 0], sizes = [16, 128], strides = [1, 1]} : vector<256x128xf32> to vector<16x128xf32>
    %cst_34 = arith.constant dense<0.000000e+00> : vector<2x128xf32>
    %83 = tpu.matmul %81, %82, %cst_34 {dimension_numbers = #tpu.dot_dimension_numbers<[1], [0], [0], [1], [0, 0, 1, 1], [], []>} : vector<2x16xf32>, vector<16x128xf32>, vector<2x128xf32> -> vector<2x128xf32>
    %84 = arith.addf %80, %83 : vector<2x128xf32>
    %85 = vector.extract_strided_slice %58 {offsets = [12, 0], sizes = [2, 16], strides = [1, 1]} : vector<32x16xf32> to vector<2x16xf32>
    %86 = vector.extract_strided_slice %59 {offsets = [96, 0], sizes = [16, 128], strides = [1, 1]} : vector<256x128xf32> to vector<16x128xf32>
    %cst_35 = arith.constant dense<0.000000e+00> : vector<2x128xf32>
    %87 = tpu.matmul %85, %86, %cst_35 {dimension_numbers = #tpu.dot_dimension_numbers<[1], [0], [0], [1], [0, 0, 1, 1], [], []>} : vector<2x16xf32>, vector<16x128xf32>, vector<2x128xf32> -> vector<2x128xf32>
    %88 = arith.addf %84, %87 : vector<2x128xf32>
    %89 = vector.extract_strided_slice %58 {offsets = [14, 0], sizes = [2, 16], strides = [1, 1]} : vector<32x16xf32> to vector<2x16xf32>
    %90 = vector.extract_strided_slice %59 {offsets = [112, 0], sizes = [16, 128], strides = [1, 1]} : vector<256x128xf32> to vector<16x128xf32>
    %cst_36 = arith.constant dense<0.000000e+00> : vector<2x128xf32>
    %91 = tpu.matmul %89, %90, %cst_36 {dimension_numbers = #tpu.dot_dimension_numbers<[1], [0], [0], [1], [0, 0, 1, 1], [], []>} : vector<2x16xf32>, vector<16x128xf32>, vector<2x128xf32> -> vector<2x128xf32>
    %92 = arith.addf %88, %91 : vector<2x128xf32>
    %93 = vector.extract_strided_slice %58 {offsets = [16, 0], sizes = [2, 16], strides = [1, 1]} : vector<32x16xf32> to vector<2x16xf32>
    %94 = vector.extract_strided_slice %59 {offsets = [128, 0], sizes = [16, 128], strides = [1, 1]} : vector<256x128xf32> to vector<16x128xf32>
    %cst_37 = arith.constant dense<0.000000e+00> : vector<2x128xf32>
    %95 = tpu.matmul %93, %94, %cst_37 {dimension_numbers = #tpu.dot_dimension_numbers<[1], [0], [0], [1], [0, 0, 1, 1], [], []>} : vector<2x16xf32>, vector<16x128xf32>, vector<2x128xf32> -> vector<2x128xf32>
    %96 = arith.addf %92, %95 : vector<2x128xf32>
    %97 = vector.extract_strided_slice %58 {offsets = [18, 0], sizes = [2, 16], strides = [1, 1]} : vector<32x16xf32> to vector<2x16xf32>
    %98 = vector.extract_strided_slice %59 {offsets = [144, 0], sizes = [16, 128], strides = [1, 1]} : vector<256x128xf32> to vector<16x128xf32>
    %cst_38 = arith.constant dense<0.000000e+00> : vector<2x128xf32>
    %99 = tpu.matmul %97, %98, %cst_38 {dimension_numbers = #tpu.dot_dimension_numbers<[1], [0], [0], [1], [0, 0, 1, 1], [], []>} : vector<2x16xf32>, vector<16x128xf32>, vector<2x128xf32> -> vector<2x128xf32>
    %100 = arith.addf %96, %99 : vector<2x128xf32>
    %101 = vector.extract_strided_slice %58 {offsets = [20, 0], sizes = [2, 16], strides = [1, 1]} : vector<32x16xf32> to vector<2x16xf32>
    %102 = vector.extract_strided_slice %59 {offsets = [160, 0], sizes = [16, 128], strides = [1, 1]} : vector<256x128xf32> to vector<16x128xf32>
    %cst_39 = arith.constant dense<0.000000e+00> : vector<2x128xf32>
    %103 = tpu.matmul %101, %102, %cst_39 {dimension_numbers = #tpu.dot_dimension_numbers<[1], [0], [0], [1], [0, 0, 1, 1], [], []>} : vector<2x16xf32>, vector<16x128xf32>, vector<2x128xf32> -> vector<2x128xf32>
    %104 = arith.addf %100, %103 : vector<2x128xf32>
    %105 = vector.extract_strided_slice %58 {offsets = [22, 0], sizes = [2, 16], strides = [1, 1]} : vector<32x16xf32> to vector<2x16xf32>
    %106 = vector.extract_strided_slice %59 {offsets = [176, 0], sizes = [16, 128], strides = [1, 1]} : vector<256x128xf32> to vector<16x128xf32>
    %cst_40 = arith.constant dense<0.000000e+00> : vector<2x128xf32>
    %107 = tpu.matmul %105, %106, %cst_40 {dimension_numbers = #tpu.dot_dimension_numbers<[1], [0], [0], [1], [0, 0, 1, 1], [], []>} : vector<2x16xf32>, vector<16x128xf32>, vector<2x128xf32> -> vector<2x128xf32>
    %108 = arith.addf %104, %107 : vector<2x128xf32>
    %109 = vector.extract_strided_slice %58 {offsets = [24, 0], sizes = [2, 16], strides = [1, 1]} : vector<32x16xf32> to vector<2x16xf32>
    %110 = vector.extract_strided_slice %59 {offsets = [192, 0], sizes = [16, 128], strides = [1, 1]} : vector<256x128xf32> to vector<16x128xf32>
    %cst_41 = arith.constant dense<0.000000e+00> : vector<2x128xf32>
    %111 = tpu.matmul %109, %110, %cst_41 {dimension_numbers = #tpu.dot_dimension_numbers<[1], [0], [0], [1], [0, 0, 1, 1], [], []>} : vector<2x16xf32>, vector<16x128xf32>, vector<2x128xf32> -> vector<2x128xf32>
    %112 = arith.addf %108, %111 : vector<2x128xf32>
    %113 = vector.extract_strided_slice %58 {offsets = [26, 0], sizes = [2, 16], strides = [1, 1]} : vector<32x16xf32> to vector<2x16xf32>
    %114 = vector.extract_strided_slice %59 {offsets = [208, 0], sizes = [16, 128], strides = [1, 1]} : vector<256x128xf32> to vector<16x128xf32>
    %cst_42 = arith.constant dense<0.000000e+00> : vector<2x128xf32>
    %115 = tpu.matmul %113, %114, %cst_42 {dimension_numbers = #tpu.dot_dimension_numbers<[1], [0], [0], [1], [0, 0, 1, 1], [], []>} : vector<2x16xf32>, vector<16x128xf32>, vector<2x128xf32> -> vector<2x128xf32>
    %116 = arith.addf %112, %115 : vector<2x128xf32>
    %117 = vector.extract_strided_slice %58 {offsets = [28, 0], sizes = [2, 16], strides = [1, 1]} : vector<32x16xf32> to vector<2x16xf32>
    %118 = vector.extract_strided_slice %59 {offsets = [224, 0], sizes = [16, 128], strides = [1, 1]} : vector<256x128xf32> to vector<16x128xf32>
    %cst_43 = arith.constant dense<0.000000e+00> : vector<2x128xf32>
    %119 = tpu.matmul %117, %118, %cst_43 {dimension_numbers = #tpu.dot_dimension_numbers<[1], [0], [0], [1], [0, 0, 1, 1], [], []>} : vector<2x16xf32>, vector<16x128xf32>, vector<2x128xf32> -> vector<2x128xf32>
    %120 = arith.addf %116, %119 : vector<2x128xf32>
    %121 = vector.extract_strided_slice %58 {offsets = [30, 0], sizes = [2, 16], strides = [1, 1]} : vector<32x16xf32> to vector<2x16xf32>
    %122 = vector.extract_strided_slice %59 {offsets = [240, 0], sizes = [16, 128], strides = [1, 1]} : vector<256x128xf32> to vector<16x128xf32>
    %cst_44 = arith.constant dense<0.000000e+00> : vector<2x128xf32>
    %123 = tpu.matmul %121, %122, %cst_44 {dimension_numbers = #tpu.dot_dimension_numbers<[1], [0], [0], [1], [0, 0, 1, 1], [], []>} : vector<2x16xf32>, vector<16x128xf32>, vector<2x128xf32> -> vector<2x128xf32>
    %124 = arith.addf %120, %123 : vector<2x128xf32>
    %c0_45 = arith.constant 0 : index
    %c0_46 = arith.constant 0 : index
    %125 = vector.load %arg7[%c0_45, %c0_46] : memref<1x128xf32, #tpu.memory_space<vmem>>, vector<1x128xf32>
    %126 = vector.broadcast %125 : vector<1x128xf32> to vector<2x128xf32>
    %127 = arith.addf %124, %126 : vector<2x128xf32>
    %128 = vector.extract_strided_slice %127 {offsets = [0, 0], sizes = [2, 10], strides = [1, 1]} : vector<2x128xf32> to vector<2x10xf32>
    %c0_47 = arith.constant 0 : index
    %c0_48 = arith.constant 0 : index
    %129 = vector.load %arg8[%c0_47, %c0_48] : memref<2x10xf32, #tpu.memory_space<vmem>>, vector<2x10xf32>
    tpu.vector_store %arg8[%c0_47, %c0_48], %128 {strides = array<i32>} : memref<2x10xf32, #tpu.memory_space<vmem>>, vector<2x10xf32>,
    return
  }
}

</mosaic_0001>

<llo_original>
// kernel: tiny_cnn_forward.1
$region0: #{tiny_cnn_forward.1}
  #allocation0 [shape = 'u32[]', space=smem, size = 0x4, offset = 0x4, fixed_abs, tag = 'smem constant byte address 0x4 - core index']
  #allocation1 [shape = 'u32[144,128]{1,0:T(1,128)}', space=vmem, size = 0x12000, scoped, tag = 'internal scratch']
  %s0 = inlined_call_operand.vmem [shape: f32[128,32], index: 0, kind: input, shape index: {}]
  %s1 = inlined_call_operand.vmem [shape: f32[32,32], index: 1, kind: input, shape index: {}]
  %s2 = inlined_call_operand.vmem [shape: f32[1,32], index: 2, kind: input, shape index: {}]
  %s3 = inlined_call_operand.vmem [shape: f32[288,128], index: 3, kind: input, shape index: {}]
  %s4 = inlined_call_operand.vmem [shape: f32[288,16], index: 4, kind: input, shape index: {}]
  %s5 = inlined_call_operand.vmem [shape: f32[1,16], index: 5, kind: input, shape index: {}]
  %s6 = inlined_call_operand.vmem [shape: f32[256,128], index: 6, kind: input, shape index: {}]
  %s7 = inlined_call_operand.vmem [shape: f32[1,128], index: 7, kind: input, shape index: {}]
  %s8 = inlined_call_operand.hbm [shape: f32[2,10], index: 8, kind: output, shape index: {}]
  %s9 = sld [smem:[#allocation0]]
  $region42: #{tiny_cnn_forward.1} parent=0
    _
  %s11 = ssub.s32 1, %s9
  %s12 = scalar_select 0, %s11, %s9
  $region1: #{tiny_cnn_forward.1} parent=0
    #allocation2 [shape = 'u8[1024]{0}', space=vmem, size = 0x400, scoped, tag = 'output window, operand 0, single buffered']
    #allocation3 [shape = 's32[1]{0}', space=sflag, size = 0x4, scoped, tag = 'scoped memory for tiny_cnn_forward.1']
    %13 = vsyncpa [#allocation3], 0
    // Predicated region
    $region2: #{tiny_cnn_forward.1} parent=1 // pred_check
      _
    $region3: #{tiny_cnn_forward.1} parent=1 // pred_check_branch
      %15 = sbr.rel (0) target = $region5
    $region4: #{tiny_cnn_forward.1} parent=1 // pred_region
      _
    $region5: #{tiny_cnn_forward.1} parent=1 // pred_fallthru
      _
    // Predicated region
    $region6: #{tiny_cnn_forward.1} parent=1 // pred_check
      _
    $region7: #{tiny_cnn_forward.1} parent=1 // pred_check_branch
      %17 = sbr.rel (0) target = $region9
    $region8: #{tiny_cnn_forward.1} parent=1 // pred_region
      _
    $region9: #{tiny_cnn_forward.1} parent=1 // pred_fallthru
      _
    // Predicated region
    $region10: #{tiny_cnn_forward.1} parent=1 // pred_check
      _
    $region11: #{tiny_cnn_forward.1} parent=1 // pred_check_branch
      %19 = sbr.rel (0) target = $region13
    $region12: #{tiny_cnn_forward.1} parent=1 // pred_region
      _
    $region13: #{tiny_cnn_forward.1} parent=1 // pred_fallthru
      _
    // Predicated region
    $region14: #{tiny_cnn_forward.1} parent=1 // pred_check
      _
    $region15: #{tiny_cnn_forward.1} parent=1 // pred_check_branch
      %21 = sbr.rel (0) target = $region17
    $region16: #{tiny_cnn_forward.1} parent=1 // pred_region
      _
    $region17: #{tiny_cnn_forward.1} parent=1 // pred_fallthru
      _
    // Predicated region
    $region18: #{tiny_cnn_forward.1} parent=1 // pred_check
      _
    $region19: #{tiny_cnn_forward.1} parent=1 // pred_check_branch
      %23 = sbr.rel (0) target = $region21
    $region20: #{tiny_cnn_forward.1} parent=1 // pred_region
      _
    $region21: #{tiny_cnn_forward.1} parent=1 // pred_fallthru
      _
    // Predicated region
    $region22: #{tiny_cnn_forward.1} parent=1 // pred_check
      _
    $region23: #{tiny_cnn_forward.1} parent=1 // pred_check_branch
      %25 = sbr.rel (0) target = $region25
    $region24: #{tiny_cnn_forward.1} parent=1 // pred_region
      _
    $region25: #{tiny_cnn_forward.1} parent=1 // pred_fallthru
      _
    // Predicated region
    $region26: #{tiny_cnn_forward.1} parent=1 // pred_check
      _
    $region27: #{tiny_cnn_forward.1} parent=1 // pred_check_branch
      %27 = sbr.rel (0) target = $region29
    $region28: #{tiny_cnn_forward.1} parent=1 // pred_region
      _
    $region29: #{tiny_cnn_forward.1} parent=1 // pred_fallthru
      _
    // Predicated region
    $region30: #{tiny_cnn_forward.1} parent=1 // pred_check
      _
    $region31: #{tiny_cnn_forward.1} parent=1 // pred_check_branch
      %29 = sbr.rel (0) target = $region33
    $region32: #{tiny_cnn_forward.1} parent=1 // pred_region
      _
    $region33: #{tiny_cnn_forward.1} parent=1 // pred_fallthru
      _
    %v30 = vld [vmem:[%s0] sm:$0xff]
    %v31 = vld [vmem:[%s0 + $0x8] sm:$0xff]
    %v32 = vld [vmem:[%s0 + $0x10] sm:$0xff]
    %v33 = vld [vmem:[%s0 + $0x18] sm:$0xff]
    %v34 = vld [vmem:[%s0 + $0x20] sm:$0xff]
    %v35 = vld [vmem:[%s0 + $0x28] sm:$0xff]
    %v36 = vld [vmem:[%s0 + $0x30] sm:$0xff]
    %v37 = vld [vmem:[%s0 + $0x38] sm:$0xff]
    %v38 = vld [vmem:[%s0 + $0x40] sm:$0xff]
    %v39 = vld [vmem:[%s0 + $0x48] sm:$0xff]
    %v40 = vld [vmem:[%s0 + $0x50] sm:$0xff]
    %v41 = vld [vmem:[%s0 + $0x58] sm:$0xff]
    %v42 = vld [vmem:[%s0 + $0x60] sm:$0xff]
    %v43 = vld [vmem:[%s0 + $0x68] sm:$0xff]
    %v44 = vld [vmem:[%s0 + $0x70] sm:$0xff]
    %v45 = vld [vmem:[%s0 + $0x78] sm:$0xff]
    %v46 = vld [vmem:[%s1] sm:$0xff]
    %v47 = vld [vmem:[%s1 + $0x8] sm:$0xff]
    %v48 = vld [vmem:[%s1 + $0x10] sm:$0xff]
    %v49 = vld [vmem:[%s1 + $0x18] sm:$0xff]
    %v50 = vld [vmem:[%s2] sm:$0x1]
    %v52 = vlaneseq
    %v53 = vshrl.u32 %v52, 7
    %v54 = vsub.s32 0, %v53
    %v55 = vrot.slane %v50, %v54
    %vm57 = vcmask 261120
    %v59 = vsel %vm57, %v30, 0
    %v62 = vsel %vm57, %v31, 0
    %v65 = vsel %vm57, %v32, 0
    %v68 = vsel %vm57, %v33, 0
    %v71 = vsel %vm57, %v34, 0
    %v74 = vsel %vm57, %v35, 0
    %v77 = vsel %vm57, %v36, 0
    %v80 = vsel %vm57, %v37, 0
    %v83 = vsel %vm57, %v38, 0
    %v86 = vsel %vm57, %v39, 0
    %v89 = vsel %vm57, %v40, 0
    %v92 = vsel %vm57, %v41, 0
    %v95 = vsel %vm57, %v42, 0
    %v98 = vsel %vm57, %v43, 0
    %v101 = vsel %vm57, %v44, 0
    %v104 = vsel %vm57, %v45, 0
    %106 = vmatprep.subr.mxu0 0.0
    %107 = vmatpush1.msra.mxu0 %v46
    %108 = vmatprep.subr.mxu0 0.0
    %109 = vmatpush1.msra.mxu0 %v47
    %110 = vmatprep.subr.mxu0 0.0
    %111 = vmatpush1.msra.mxu0 %v48
    %112 = vmatprep.subr.mxu0 0.0
    %113 = vmatpush1.msra.mxu0 %v49
    %114 = vmatprep.subr.mxu0 0.0
    %115 = vmatpush1.msra.mxu0 0.0
    %116 = vmatprep.subr.mxu0 0.0
    %117 = vmatpush1.msra.mxu0 0.0
    %118 = vmatprep.subr.mxu0 0.0
    %119 = vmatpush1.msra.mxu0 0.0
    %120 = vmatprep.subr.mxu0 0.0
    %121 = vmatpush1.msra.mxu0 0.0
    %122 = vmatprep.subr.mxu0 0.0
    %123 = vmatpush1.msra.mxu0 0.0
    %124 = vmatprep.subr.mxu0 0.0
    %125 = vmatpush1.msra.mxu0 0.0
    %126 = vmatprep.subr.mxu0 0.0
    %127 = vmatpush1.msra.mxu0 0.0
    %128 = vmatprep.subr.mxu0 0.0
    %129 = vmatpush1.msra.mxu0 0.0
    %130 = vmatprep.subr.mxu0 0.0
    %131 = vmatpush1.msra.mxu0 0.0
    %132 = vmatprep.subr.mxu0 0.0
    %133 = vmatpush1.msra.mxu0 0.0
    %134 = vmatprep.subr.mxu0 0.0
    %135 = vmatpush1.msra.mxu0 0.0
    %136 = vmatprep.subr.mxu0 0.0
    %137 = vmatpush1.msra.mxu0 0.0
    %138 = vmatprep.subr.mxu0 0.0
    %139 = vmatpush1.msra.mxu0 0.0
    %140 = vmatprep.subr.mxu0 0.0
    %141 = vmatpush1.msra.mxu0 0.0
    %142 = vmatprep.subr.mxu0 0.0
    %143 = vmatpush1.msra.mxu0 0.0
    %144 = vmatprep.subr.mxu0 0.0
    %145 = vmatpush1.msra.mxu0 0.0
    %146 = vmatprep.subr.mxu0 0.0
    %147 = vmatpush1.msra.mxu0 0.0
    %148 = vmatprep.subr.mxu0 0.0
    %149 = vmatpush1.msra.mxu0 0.0
    %150 = vmatprep.subr.mxu0 0.0
    %151 = vmatpush1.msra.mxu0 0.0
    %152 = vmatprep.subr.mxu0 0.0
    %153 = vmatpush1.msra.mxu0 0.0
    %154 = vmatprep.subr.mxu0 0.0
    %155 = vmatpush1.msra.mxu0 0.0
    %156 = vmatprep.subr.mxu0 0.0
    %157 = vmatpush1.msra.mxu0 0.0
    %158 = vmatprep.subr.mxu0 0.0
    %159 = vmatpush1.msra.mxu0 0.0
    %160 = vmatprep.subr.mxu0 0.0
    %161 = vmatpush1.msra.mxu0 0.0
    %162 = vmatprep.subr.mxu0 0.0
    %163 = vmatpush1.msra.mxu0 0.0
    %164 = vmatprep.subr.mxu0 0.0
    %165 = vmatpush1.msra.mxu0 0.0
    %166 = vmatprep.subr.mxu0 0.0
    %167 = vmatpush1.msra.mxu0 0.0
    %168 = vmatprep.subr.mxu0 0.0
    %169 = vmatpush1.msra.mxu0 0.0
    %170 = vmatprep.mubr.f32.mxu0 0.0
    %171 = vmatmul.mubr.f32.gmra.mrb[0].mxu0 %v59
    %v172 = vpop.f32.mrb[0].mxu0
    %v173 = vadd.f32 %v55, %v172
    %v174 = vpop.f32.mrb[0].mxu0
    %175 = vmatprep.mubr.f32.mxu0 0.0
    %176 = vmatmul.mubr.f32.gmra.mrb[0].mxu0 %v62
    %v177 = vpop.f32.mrb[0].mxu0
    %v178 = vadd.f32 %v55, %v177
    %v179 = vpop.f32.mrb[0].mxu0
    %180 = vmatprep.mubr.f32.mxu0 0.0
    %181 = vmatmul.mubr.f32.gmra.mrb[0].mxu0 %v65
    %v182 = vpop.f32.mrb[0].mxu0
    %v183 = vadd.f32 %v55, %v182
    %v184 = vpop.f32.mrb[0].mxu0
    %185 = vmatprep.mubr.f32.mxu0 0.0
    %186 = vmatmul.mubr.f32.gmra.mrb[0].mxu0 %v68
    %v187 = vpop.f32.mrb[0].mxu0
    %v188 = vadd.f32 %v55, %v187
    %v189 = vpop.f32.mrb[0].mxu0
    %190 = vmatprep.mubr.f32.mxu0 0.0
    %191 = vmatmul.mubr.f32.gmra.mrb[0].mxu0 %v71
    %v192 = vpop.f32.mrb[0].mxu0
    %v193 = vadd.f32 %v55, %v192
    %v194 = vpop.f32.mrb[0].mxu0
    %195 = vmatprep.mubr.f32.mxu0 0.0
    %196 = vmatmul.mubr.f32.gmra.mrb[0].mxu0 %v74
    %v197 = vpop.f32.mrb[0].mxu0
    %v198 = vadd.f32 %v55, %v197
    %v199 = vpop.f32.mrb[0].mxu0
    %200 = vmatprep.mubr.f32.mxu0 0.0
    %201 = vmatmul.mubr.f32.gmra.mrb[0].mxu0 %v77
    %v202 = vpop.f32.mrb[0].mxu0
    %v203 = vadd.f32 %v55, %v202
    %v204 = vpop.f32.mrb[0].mxu0
    %205 = vmatprep.mubr.f32.mxu0 0.0
    %206 = vmatmul.mubr.f32.gmra.mrb[0].mxu0 %v80
    %v207 = vpop.f32.mrb[0].mxu0
    %v208 = vadd.f32 %v55, %v207
    %v209 = vpop.f32.mrb[0].mxu0
    %210 = vmatprep.mubr.f32.mxu0 0.0
    %211 = vmatmul.mubr.f32.gmra.mrb[0].mxu0 %v83
    %v212 = vpop.f32.mrb[0].mxu0
    %v213 = vadd.f32 %v55, %v212
    %v214 = vpop.f32.mrb[0].mxu0
    %215 = vmatprep.mubr.f32.mxu0 0.0
    %216 = vmatmul.mubr.f32.gmra.mrb[0].mxu0 %v86
    %v217 = vpop.f32.mrb[0].mxu0
    %v218 = vadd.f32 %v55, %v217
    %v219 = vpop.f32.mrb[0].mxu0
    %220 = vmatprep.mubr.f32.mxu0 0.0
    %221 = vmatmul.mubr.f32.gmra.mrb[0].mxu0 %v89
    %v222 = vpop.f32.mrb[0].mxu0
    %v223 = vadd.f32 %v55, %v222
    %v224 = vpop.f32.mrb[0].mxu0
    %225 = vmatprep.mubr.f32.mxu0 0.0
    %226 = vmatmul.mubr.f32.gmra.mrb[0].mxu0 %v92
    %v227 = vpop.f32.mrb[0].mxu0
    %v228 = vadd.f32 %v55, %v227
    %v229 = vpop.f32.mrb[0].mxu0
    %230 = vmatprep.mubr.f32.mxu0 0.0
    %231 = vmatmul.mubr.f32.gmra.mrb[0].mxu0 %v95
    %v232 = vpop.f32.mrb[0].mxu0
    %v233 = vadd.f32 %v55, %v232
    %v234 = vpop.f32.mrb[0].mxu0
    %235 = vmatprep.mubr.f32.mxu0 0.0
    %236 = vmatmul.mubr.f32.gmra.mrb[0].mxu0 %v98
    %v237 = vpop.f32.mrb[0].mxu0
    %v238 = vadd.f32 %v55, %v237
    %v239 = vpop.f32.mrb[0].mxu0
    %240 = vmatprep.mubr.f32.mxu0 0.0
    %241 = vmatmul.mubr.f32.gmra.mrb[0].mxu0 %v101
    %v242 = vpop.f32.mrb[0].mxu0
    %v243 = vadd.f32 %v55, %v242
    %v244 = vpop.f32.mrb[0].mxu0
    %245 = vmatprep.mubr.f32.mxu0 0.0
    %246 = vmatmul.mubr.f32.gmra.mrb[0].mxu0 %v104
    %v247 = vpop.f32.mrb[0].mxu0
    %v248 = vadd.f32 %v55, %v247
    %v249 = vpop.f32.mrb[0].mxu0
    %250 = vdwg.mxu0
    %vm251 = vcmp.ge.f32.partialorder %v173, 0.0
    %vm252 = vcmp.ge.f32.partialorder %v178, 0.0
    %vm253 = vcmp.ge.f32.partialorder %v183, 0.0
    %vm254 = vcmp.ge.f32.partialorder %v188, 0.0
    %vm255 = vcmp.ge.f32.partialorder %v193, 0.0
    %vm256 = vcmp.ge.f32.partialorder %v198, 0.0
    %vm257 = vcmp.ge.f32.partialorder %v203, 0.0
    %vm258 = vcmp.ge.f32.partialorder %v208, 0.0
    %vm259 = vcmp.ge.f32.partialorder %v213, 0.0
    %vm260 = vcmp.ge.f32.partialorder %v218, 0.0
    %vm261 = vcmp.ge.f32.partialorder %v223, 0.0
    %vm262 = vcmp.ge.f32.partialorder %v228, 0.0
    %vm263 = vcmp.ge.f32.partialorder %v233, 0.0
    %vm264 = vcmp.ge.f32.partialorder %v238, 0.0
    %vm265 = vcmp.ge.f32.partialorder %v243, 0.0
    %vm266 = vcmp.ge.f32.partialorder %v248, 0.0
    %v267 = vmul.f32 %v173, 0.01
    %v268 = vmul.f32 %v178, 0.01
    %v269 = vmul.f32 %v183, 0.01
    %v270 = vmul.f32 %v188, 0.01
    %v271 = vmul.f32 %v193, 0.01
    %v272 = vmul.f32 %v198, 0.01
    %v273 = vmul.f32 %v203, 0.01
    %v274 = vmul.f32 %v208, 0.01
    %v275 = vmul.f32 %v213, 0.01
    %v276 = vmul.f32 %v218, 0.01
    %v277 = vmul.f32 %v223, 0.01
    %v278 = vmul.f32 %v228, 0.01
    %v279 = vmul.f32 %v233, 0.01
    %v280 = vmul.f32 %v238, 0.01
    %v281 = vmul.f32 %v243, 0.01
    %v282 = vmul.f32 %v248, 0.01
    %v283 = vsel %vm251, %v173, %v267
    %v284 = vsel %vm252, %v178, %v268
    %v285 = vsel %vm253, %v183, %v269
    %v286 = vsel %vm254, %v188, %v270
    %v287 = vsel %vm255, %v193, %v271
    %v288 = vsel %vm256, %v198, %v272
    %v289 = vsel %vm257, %v203, %v273
    %v290 = vsel %vm258, %v208, %v274
    %v291 = vsel %vm259, %v213, %v275
    %v292 = vsel %vm260, %v218, %v276
    %v293 = vsel %vm261, %v223, %v277
    %v294 = vsel %vm262, %v228, %v278
    %v295 = vsel %vm263, %v233, %v279
    %v296 = vsel %vm264, %v238, %v280
    %v297 = vsel %vm265, %v243, %v281
    %v298 = vsel %vm266, %v248, %v282
    %v299 = vld [vmem:[%s3] sm:$0xff]
    %v300 = vld [vmem:[%s3 + $0x8] sm:$0xff]
    %v301 = vld [vmem:[%s3 + $0x10] sm:$0xff]
    %v302 = vld [vmem:[%s3 + $0x18] sm:$0xff]
    %v303 = vld [vmem:[%s3 + $0x20] sm:$0xff]
    %v304 = vld [vmem:[%s3 + $0x28] sm:$0xff]
    %v305 = vld [vmem:[%s3 + $0x30] sm:$0xff]
    %v306 = vld [vmem:[%s3 + $0x38] sm:$0xff]
    %v307 = vld [vmem:[%s3 + $0x40] sm:$0xff]
    %v308 = vld [vmem:[%s3 + $0x48] sm:$0xff]
    %v309 = vld [vmem:[%s3 + $0x50] sm:$0xff]
    %v310 = vld [vmem:[%s3 + $0x58] sm:$0xff]
    %v311 = vld [vmem:[%s3 + $0x60] sm:$0xff]
    %v312 = vld [vmem:[%s3 + $0x68] sm:$0xff]
    %v313 = vld [vmem:[%s3 + $0x70] sm:$0xff]
    %v314 = vld [vmem:[%s3 + $0x78] sm:$0xff]
    %v315 = vld [vmem:[%s3 + $0x80] sm:$0xff]
    %v316 = vld [vmem:[%s3 + $0x88] sm:$0xff]
    %v317 = vld [vmem:[%s3 + $0x90] sm:$0xff]
    %v318 = vld [vmem:[%s3 + $0x98] sm:$0xff]
    %v319 = vld [vmem:[%s3 + $0xa0] sm:$0xff]
    %v320 = vld [vmem:[%s3 + $0xa8] sm:$0xff]
    %v321 = vld [vmem:[%s3 + $0xb0] sm:$0xff]
    %v322 = vld [vmem:[%s3 + $0xb8] sm:$0xff]
    %v323 = vld [vmem:[%s3 + $0xc0] sm:$0xff]
    %v324 = vld [vmem:[%s3 + $0xc8] sm:$0xff]
    %v325 = vld [vmem:[%s3 + $0xd0] sm:$0xff]
    %v326 = vld [vmem:[%s3 + $0xd8] sm:$0xff]
    %v327 = vld [vmem:[%s3 + $0xe0] sm:$0xff]
    %v328 = vld [vmem:[%s3 + $0xe8] sm:$0xff]
    %v329 = vld [vmem:[%s3 + $0xf0] sm:$0xff]
    %v330 = vld [vmem:[%s3 + $0xf8] sm:$0xff]
    %v331 = vld [vmem:[%s3 + $0x100] sm:$0xff]
    %v332 = vld [vmem:[%s3 + $0x108] sm:$0xff]
    %v333 = vld [vmem:[%s3 + $0x110] sm:$0xff]
    %v334 = vld [vmem:[%s3 + $0x118] sm:$0xff]
    %335 = vmatprep.subr.mxu0 0.0
    %336 = vmatpush1.msra.mxu0 %v283
    %337 = vmatprep.subr.mxu0 0.0
    %338 = vmatpush1.msra.mxu0 %v284
    %339 = vmatprep.subr.mxu0 0.0
    %340 = vmatpush1.msra.mxu0 %v285
    %341 = vmatprep.subr.mxu0 0.0
    %342 = vmatpush1.msra.mxu0 %v286
    %343 = vmatprep.subr.mxu0 0.0
    %344 = vmatpush1.msra.mxu0 %v287
    %345 = vmatprep.subr.mxu0 0.0
    %346 = vmatpush1.msra.mxu0 %v288
    %347 = vmatprep.subr.mxu0 0.0
    %348 = vmatpush1.msra.mxu0 %v289
    %349 = vmatprep.subr.mxu0 0.0
    %350 = vmatpush1.msra.mxu0 %v290
    %351 = vmatprep.subr.mxu0 0.0
    %352 = vmatpush1.msra.mxu0 %v291
    %353 = vmatprep.subr.mxu0 0.0
    %354 = vmatpush1.msra.mxu0 %v292
    %355 = vmatprep.subr.mxu0 0.0
    %356 = vmatpush1.msra.mxu0 %v293
    %357 = vmatprep.subr.mxu0 0.0
    %358 = vmatpush1.msra.mxu0 %v294
    %359 = vmatprep.subr.mxu0 0.0
    %360 = vmatpush1.msra.mxu0 %v295
    %361 = vmatprep.subr.mxu0 0.0
    %362 = vmatpush1.msra.mxu0 %v296
    %363 = vmatprep.subr.mxu0 0.0
    %364 = vmatpush1.msra.mxu0 %v297
    %365 = vmatprep.subr.mxu0 0.0
    %366 = vmatpush1.msra.mxu0 %v298
    %367 = vmatprep.subr.mxu0 0.0
    %368 = vmatpush1.msra.mxu0 0.0
    %369 = vmatprep.subr.mxu0 0.0
    %370 = vmatpush1.msra.mxu0 0.0
    %371 = vmatprep.subr.mxu0 0.0
    %372 = vmatpush1.msra.mxu0 0.0
    %373 = vmatprep.subr.mxu0 0.0
    %374 = vmatpush1.msra.mxu0 0.0
    %375 = vmatprep.subr.mxu0 0.0
    %376 = vmatpush1.msra.mxu0 0.0
    %377 = vmatprep.subr.mxu0 0.0
    %378 = vmatpush1.msra.mxu0 0.0
    %379 = vmatprep.subr.mxu0 0.0
    %380 = vmatpush1.msra.mxu0 0.0
    %381 = vmatprep.subr.mxu0 0.0
    %382 = vmatpush1.msra.mxu0 0.0
    %383 = vmatprep.subr.mxu0 0.0
    %384 = vmatpush1.msra.mxu0 0.0
    %385 = vmatprep.subr.mxu0 0.0
    %386 = vmatpush1.msra.mxu0 0.0
    %387 = vmatprep.subr.mxu0 0.0
    %388 = vmatpush1.msra.mxu0 0.0
    %389 = vmatprep.subr.mxu0 0.0
    %390 = vmatpush1.msra.mxu0 0.0
    %391 = vmatprep.subr.mxu0 0.0
    %392 = vmatpush1.msra.mxu0 0.0
    %393 = vmatprep.subr.mxu0 0.0
    %394 = vmatpush1.msra.mxu0 0.0
    %395 = vmatprep.subr.mxu0 0.0
    %396 = vmatpush1.msra.mxu0 0.0
    %397 = vmatprep.subr.mxu0 0.0
    %398 = vmatpush1.msra.mxu0 0.0
    %399 = vmatprep.mubr.f32.mxu0 0.0
    %400 = vmatmul.mubr.f32.gmra.mrb[0].mxu0 %v299
    %v401 = vpop.f32.mrb[0].mxu0
    %v402 = vadd.f32 0.0, %v401
    %v403 = vpop.f32.mrb[0].mxu0
    %404 = vmatprep.mubr.f32.mxu0 0.0
    %405 = vmatmul.mubr.f32.gmra.mrb[0].mxu0 %v300
    %v406 = vpop.f32.mrb[0].mxu0
    %v407 = vadd.f32 0.0, %v406
    %v408 = vpop.f32.mrb[0].mxu0
    %409 = vmatprep.mubr.f32.mxu0 0.0
    %410 = vmatmul.mubr.f32.gmra.mrb[0].mxu0 %v301
    %v411 = vpop.f32.mrb[0].mxu0
    %v412 = vadd.f32 0.0, %v411
    %v413 = vpop.f32.mrb[0].mxu0
    %414 = vmatprep.mubr.f32.mxu0 0.0
    %415 = vmatmul.mubr.f32.gmra.mrb[0].mxu0 %v302
    %v416 = vpop.f32.mrb[0].mxu0
    %v417 = vadd.f32 0.0, %v416
    %v418 = vpop.f32.mrb[0].mxu0
    %419 = vmatprep.mubr.f32.mxu0 0.0
    %420 = vmatmul.mubr.f32.gmra.mrb[0].mxu0 %v303
    %v421 = vpop.f32.mrb[0].mxu0
    %v422 = vadd.f32 0.0, %v421
    %v423 = vpop.f32.mrb[0].mxu0
    %424 = vmatprep.mubr.f32.mxu0 0.0
    %425 = vmatmul.mubr.f32.gmra.mrb[0].mxu0 %v304
    %v426 = vpop.f32.mrb[0].mxu0
    %v427 = vadd.f32 0.0, %v426
    %v428 = vpop.f32.mrb[0].mxu0
    %429 = vmatprep.mubr.f32.mxu0 0.0
    %430 = vmatmul.mubr.f32.gmra.mrb[0].mxu0 %v305
    %v431 = vpop.f32.mrb[0].mxu0
    %v432 = vadd.f32 0.0, %v431
    %v433 = vpop.f32.mrb[0].mxu0
    %434 = vmatprep.mubr.f32.mxu0 0.0
    %435 = vmatmul.mubr.f32.gmra.mrb[0].mxu0 %v306
    %v436 = vpop.f32.mrb[0].mxu0
    %v437 = vadd.f32 0.0, %v436
    %v438 = vpop.f32.mrb[0].mxu0
    %439 = vmatprep.mubr.f32.mxu0 0.0
    %440 = vmatmul.mubr.f32.gmra.mrb[0].mxu0 %v307
    %v441 = vpop.f32.mrb[0].mxu0
    %v442 = vadd.f32 0.0, %v441
    %v443 = vpop.f32.mrb[0].mxu0
    %444 = vmatprep.mubr.f32.mxu0 0.0
    %445 = vmatmul.mubr.f32.gmra.mrb[0].mxu0 %v308
    %v446 = vpop.f32.mrb[0].mxu0
    %v447 = vadd.f32 0.0, %v446
    %v448 = vpop.f32.mrb[0].mxu0
    %449 = vmatprep.mubr.f32.mxu0 0.0
    %450 = vmatmul.mubr.f32.gmra.mrb[0].mxu0 %v309
    %v451 = vpop.f32.mrb[0].mxu0
    %v452 = vadd.f32 0.0, %v451
    %v453 = vpop.f32.mrb[0].mxu0
    %454 = vmatprep.mubr.f32.mxu0 0.0
    %455 = vmatmul.mubr.f32.gmra.mrb[0].mxu0 %v310
    %v456 = vpop.f32.mrb[0].mxu0
    %v457 = vadd.f32 0.0, %v456
    %v458 = vpop.f32.mrb[0].mxu0
    %459 = vmatprep.mubr.f32.mxu0 0.0
    %460 = vmatmul.mubr.f32.gmra.mrb[0].mxu0 %v311
    %v461 = vpop.f32.mrb[0].mxu0
    %v462 = vadd.f32 0.0, %v461
    %v463 = vpop.f32.mrb[0].mxu0
    %464 = vmatprep.mubr.f32.mxu0 0.0
    %465 = vmatmul.mubr.f32.gmra.mrb[0].mxu0 %v312
    %v466 = vpop.f32.mrb[0].mxu0
    %v467 = vadd.f32 0.0, %v466
    %v468 = vpop.f32.mrb[0].mxu0
    %469 = vmatprep.mubr.f32.mxu0 0.0
    %470 = vmatmul.mubr.f32.gmra.mrb[0].mxu0 %v313
    %v471 = vpop.f32.mrb[0].mxu0
    %v472 = vadd.f32 0.0, %v471
    %v473 = vpop.f32.mrb[0].mxu0
    %474 = vmatprep.mubr.f32.mxu0 0.0
    %475 = vmatmul.mubr.f32.gmra.mrb[0].mxu0 %v314
    %v476 = vpop.f32.mrb[0].mxu0
    %v477 = vadd.f32 0.0, %v476
    %v478 = vpop.f32.mrb[0].mxu0
    %479 = vmatprep.mubr.f32.mxu0 0.0
    %480 = vmatmul.mubr.f32.gmra.mrb[0].mxu0 %v315
    %v481 = vpop.f32.mrb[0].mxu0
    %v482 = vadd.f32 0.0, %v481
    %v483 = vpop.f32.mrb[0].mxu0
    %484 = vmatprep.mubr.f32.mxu0 0.0
    %485 = vmatmul.mubr.f32.gmra.mrb[0].mxu0 %v316
    %v486 = vpop.f32.mrb[0].mxu0
    %v487 = vadd.f32 0.0, %v486
    %v488 = vpop.f32.mrb[0].mxu0
    %489 = vmatprep.mubr.f32.mxu0 0.0
    %490 = vmatmul.mubr.f32.gmra.mrb[0].mxu0 %v317
    %v491 = vpop.f32.mrb[0].mxu0
    %v492 = vadd.f32 0.0, %v491
    %v493 = vpop.f32.mrb[0].mxu0
    %494 = vmatprep.mubr.f32.mxu0 0.0
    %495 = vmatmul.mubr.f32.gmra.mrb[0].mxu0 %v318
    %v496 = vpop.f32.mrb[0].mxu0
    %v497 = vadd.f32 0.0, %v496
    %v498 = vpop.f32.mrb[0].mxu0
    %499 = vmatprep.mubr.f32.mxu0 0.0
    %500 = vmatmul.mubr.f32.gmra.mrb[0].mxu0 %v319
    %v501 = vpop.f32.mrb[0].mxu0
    %v502 = vadd.f32 0.0, %v501
    %v503 = vpop.f32.mrb[0].mxu0
    %504 = vmatprep.mubr.f32.mxu0 0.0
    %505 = vmatmul.mubr.f32.gmra.mrb[0].mxu0 %v320
    %v506 = vpop.f32.mrb[0].mxu0
    %v507 = vadd.f32 0.0, %v506
    %v508 = vpop.f32.mrb[0].mxu0
    %509 = vmatprep.mubr.f32.mxu0 0.0
    %510 = vmatmul.mubr.f32.gmra.mrb[0].mxu0 %v321
    %v511 = vpop.f32.mrb[0].mxu0
    %v512 = vadd.f32 0.0, %v511
    %v513 = vpop.f32.mrb[0].mxu0
    %514 = vmatprep.mubr.f32.mxu0 0.0
    %515 = vmatmul.mubr.f32.gmra.mrb[0].mxu0 %v322
    %v516 = vpop.f32.mrb[0].mxu0
    %v517 = vadd.f32 0.0, %v516
    %v518 = vpop.f32.mrb[0].mxu0
    %519 = vmatprep.mubr.f32.mxu0 0.0
    %520 = vmatmul.mubr.f32.gmra.mrb[0].mxu0 %v323
    %v521 = vpop.f32.mrb[0].mxu0
    %v522 = vadd.f32 0.0, %v521
    %v523 = vpop.f32.mrb[0].mxu0
    %524 = vmatprep.mubr.f32.mxu0 0.0
    %525 = vmatmul.mubr.f32.gmra.mrb[0].mxu0 %v324
    %v526 = vpop.f32.mrb[0].mxu0
    %v527 = vadd.f32 0.0, %v526
    %v528 = vpop.f32.mrb[0].mxu0
    %529 = vmatprep.mubr.f32.mxu0 0.0
    %530 = vmatmul.mubr.f32.gmra.mrb[0].mxu0 %v325
    %v531 = vpop.f32.mrb[0].mxu0
    %v532 = vadd.f32 0.0, %v531
    %v533 = vpop.f32.mrb[0].mxu0
    %534 = vmatprep.mubr.f32.mxu0 0.0
    %535 = vmatmul.mubr.f32.gmra.mrb[0].mxu0 %v326
    %v536 = vpop.f32.mrb[0].mxu0
    %v537 = vadd.f32 0.0, %v536
    %v538 = vpop.f32.mrb[0].mxu0
    %539 = vmatprep.mubr.f32.mxu0 0.0
    %540 = vmatmul.mubr.f32.gmra.mrb[0].mxu0 %v327
    %v541 = vpop.f32.mrb[0].mxu0
    %v542 = vadd.f32 0.0, %v541
    %v543 = vpop.f32.mrb[0].mxu0
    %544 = vmatprep.mubr.f32.mxu0 0.0
    %545 = vmatmul.mubr.f32.gmra.mrb[0].mxu0 %v328
    %v546 = vpop.f32.mrb[0].mxu0
    %v547 = vadd.f32 0.0, %v546
    %v548 = vpop.f32.mrb[0].mxu0
    %549 = vmatprep.mubr.f32.mxu0 0.0
    %550 = vmatmul.mubr.f32.gmra.mrb[0].mxu0 %v329
    %v551 = vpop.f32.mrb[0].mxu0
    %v552 = vadd.f32 0.0, %v551
    %v553 = vpop.f32.mrb[0].mxu0
    %554 = vmatprep.mubr.f32.mxu0 0.0
    %555 = vmatmul.mubr.f32.gmra.mrb[0].mxu0 %v330
    %v556 = vpop.f32.mrb[0].mxu0
    %v557 = vadd.f32 0.0, %v556
    %v558 = vpop.f32.mrb[0].mxu0
    %559 = vmatprep.mubr.f32.mxu0 0.0
    %560 = vmatmul.mubr.f32.gmra.mrb[0].mxu0 %v331
    %v561 = vpop.f32.mrb[0].mxu0
    %v562 = vadd.f32 0.0, %v561
    %v563 = vpop.f32.mrb[0].mxu0
    %564 = vmatprep.mubr.f32.mxu0 0.0
    %565 = vmatmul.mubr.f32.gmra.mrb[0].mxu0 %v332
    %v566 = vpop.f32.mrb[0].mxu0
    %v567 = vadd.f32 0.0, %v566
    %v568 = vpop.f32.mrb[0].mxu0
    %569 = vmatprep.mubr.f32.mxu0 0.0
    %570 = vmatmul.mubr.f32.gmra.mrb[0].mxu0 %v333
    %v571 = vpop.f32.mrb[0].mxu0
    %v572 = vadd.f32 0.0, %v571
    %v573 = vpop.f32.mrb[0].mxu0
    %574 = vmatprep.mubr.f32.mxu0 0.0
    %575 = vmatmul.mubr.f32.gmra.mrb[0].mxu0 %v334
    %v576 = vpop.f32.mrb[0].mxu0
    %v577 = vadd.f32 0.0, %v576
    %v578 = vpop.f32.mrb[0].mxu0
    %579 = vdwg.mxu0
    %v580 = vld [vmem:[%s4] sm:$0xff]
    %v581 = vld [vmem:[%s4 + $0x8] sm:$0xff]
    %v582 = vld [vmem:[%s4 + $0x10] sm:$0xff]
    %v583 = vld [vmem:[%s4 + $0x18] sm:$0xff]
    %v584 = vld [vmem:[%s4 + $0x20] sm:$0xff]
    %v585 = vld [vmem:[%s4 + $0x28] sm:$0xff]
    %v586 = vld [vmem:[%s4 + $0x30] sm:$0xff]
    %v587 = vld [vmem:[%s4 + $0x38] sm:$0xff]
    %v588 = vld [vmem:[%s4 + $0x40] sm:$0xff]
    %v589 = vld [vmem:[%s4 + $0x48] sm:$0xff]
    %v590 = vld [vmem:[%s4 + $0x50] sm:$0xff]
    %v591 = vld [vmem:[%s4 + $0x58] sm:$0xff]
    %v592 = vld [vmem:[%s4 + $0x60] sm:$0xff]
    %v593 = vld [vmem:[%s4 + $0x68] sm:$0xff]
    %v594 = vld [vmem:[%s4 + $0x70] sm:$0xff]
    %v595 = vld [vmem:[%s4 + $0x78] sm:$0xff]
    %v596 = vld [vmem:[%s4 + $0x80] sm:$0xff]
    %v597 = vld [vmem:[%s4 + $0x88] sm:$0xff]
    %v598 = vld [vmem:[%s4 + $0x90] sm:$0xff]
    %v599 = vld [vmem:[%s4 + $0x98] sm:$0xff]
    %v600 = vld [vmem:[%s4 + $0xa0] sm:$0xff]
    %v601 = vld [vmem:[%s4 + $0xa8] sm:$0xff]
    %v602 = vld [vmem:[%s4 + $0xb0] sm:$0xff]
    %v603 = vld [vmem:[%s4 + $0xb8] sm:$0xff]
    %v604 = vld [vmem:[%s4 + $0xc0] sm:$0xff]
    %v605 = vld [vmem:[%s4 + $0xc8] sm:$0xff]
    %v606 = vld [vmem:[%s4 + $0xd0] sm:$0xff]
    %v607 = vld [vmem:[%s4 + $0xd8] sm:$0xff]
    %v608 = vld [vmem:[%s4 + $0xe0] sm:$0xff]
    %v609 = vld [vmem:[%s4 + $0xe8] sm:$0xff]
    %v610 = vld [vmem:[%s4 + $0xf0] sm:$0xff]
    %v611 = vld [vmem:[%s4 + $0xf8] sm:$0xff]
    %v612 = vld [vmem:[%s4 + $0x100] sm:$0xff]
    %v613 = vld [vmem:[%s4 + $0x108] sm:$0xff]
    %v614 = vld [vmem:[%s4 + $0x110] sm:$0xff]
    %v615 = vld [vmem:[%s4 + $0x118] sm:$0xff]
    %v617 = vsel %vm57, %v422, 0
    %v620 = vsel %vm57, %v427, 0
    %v623 = vsel %vm57, %v432, 0
    %v626 = vsel %vm57, %v437, 0
    %628 = vmatprep.subr.mxu0 0.0
    %629 = vmatpush1.msra.mxu0 %v584
    %630 = vmatprep.subr.mxu0 0.0
    %631 = vmatpush1.msra.mxu0 %v585
    %632 = vmatprep.subr.mxu0 0.0
    %633 = vmatpush1.msra.mxu0 %v586
    %634 = vmatprep.subr.mxu0 0.0
    %635 = vmatpush1.msra.mxu0 %v587
    %636 = vmatprep.subr.mxu0 0.0
    %637 = vmatpush1.msra.mxu0 0.0
    %638 = vmatprep.subr.mxu0 0.0
    %639 = vmatpush1.msra.mxu0 0.0
    %640 = vmatprep.subr.mxu0 0.0
    %641 = vmatpush1.msra.mxu0 0.0
    %642 = vmatprep.subr.mxu0 0.0
    %643 = vmatpush1.msra.mxu0 0.0
    %644 = vmatprep.subr.mxu0 0.0
    %645 = vmatpush1.msra.mxu0 0.0
    %646 = vmatprep.subr.mxu0 0.0
    %647 = vmatpush1.msra.mxu0 0.0
    %648 = vmatprep.subr.mxu0 0.0
    %649 = vmatpush1.msra.mxu0 0.0
    %650 = vmatprep.subr.mxu0 0.0
    %651 = vmatpush1.msra.mxu0 0.0
    %652 = vmatprep.subr.mxu0 0.0
    %653 = vmatpush1.msra.mxu0 0.0
    %654 = vmatprep.subr.mxu0 0.0
    %655 = vmatpush1.msra.mxu0 0.0
    %656 = vmatprep.subr.mxu0 0.0
    %657 = vmatpush1.msra.mxu0 0.0
    %658 = vmatprep.subr.mxu0 0.0
    %659 = vmatpush1.msra.mxu0 0.0
    %660 = vmatprep.subr.mxu0 0.0
    %661 = vmatpush1.msra.mxu0 0.0
    %662 = vmatprep.subr.mxu0 0.0
    %663 = vmatpush1.msra.mxu0 0.0
    %664 = vmatprep.subr.mxu0 0.0
    %665 = vmatpush1.msra.mxu0 0.0
    %666 = vmatprep.subr.mxu0 0.0
    %667 = vmatpush1.msra.mxu0 0.0
    %668 = vmatprep.subr.mxu0 0.0
    %669 = vmatpush1.msra.mxu0 0.0
    %670 = vmatprep.subr.mxu0 0.0
    %671 = vmatpush1.msra.mxu0 0.0
    %672 = vmatprep.subr.mxu0 0.0
    %673 = vmatpush1.msra.mxu0 0.0
    %674 = vmatprep.subr.mxu0 0.0
    %675 = vmatpush1.msra.mxu0 0.0
    %676 = vmatprep.subr.mxu0 0.0
    %677 = vmatpush1.msra.mxu0 0.0
    %678 = vmatprep.subr.mxu0 0.0
    %679 = vmatpush1.msra.mxu0 0.0
    %680 = vmatprep.subr.mxu0 0.0
    %681 = vmatpush1.msra.mxu0 0.0
    %682 = vmatprep.subr.mxu0 0.0
    %683 = vmatpush1.msra.mxu0 0.0
    %684 = vmatprep.subr.mxu0 0.0
    %685 = vmatpush1.msra.mxu0 0.0
    %686 = vmatprep.subr.mxu0 0.0
    %687 = vmatpush1.msra.mxu0 0.0
    %688 = vmatprep.subr.mxu0 0.0
    %689 = vmatpush1.msra.mxu0 0.0
    %690 = vmatprep.subr.mxu0 0.0
    %691 = vmatpush1.msra.mxu0 0.0
    %692 = vmatprep.mubr.f32.mxu0 0.0
    %693 = vmatmul.mubr.f32.gmra.mrb[0].mxu0 %v617
    %v694 = vpop.f32.mrb[0].mxu0
    %v695 = vadd.f32 0.0, %v694
    %v696 = vpop.f32.mrb[0].mxu0
    %697 = vmatprep.mubr.f32.mxu0 0.0
    %698 = vmatmul.mubr.f32.gmra.mrb[0].mxu0 %v620
    %v699 = vpop.f32.mrb[0].mxu0
    %v700 = vadd.f32 0.0, %v699
    %v701 = vpop.f32.mrb[0].mxu0
    %702 = vmatprep.mubr.f32.mxu0 0.0
    %703 = vmatmul.mubr.f32.gmra.mrb[0].mxu0 %v623
    %v704 = vpop.f32.mrb[0].mxu0
    %v705 = vadd.f32 0.0, %v704
    %v706 = vpop.f32.mrb[0].mxu0
    %707 = vmatprep.mubr.f32.mxu0 0.0
    %708 = vmatmul.mubr.f32.gmra.mrb[0].mxu0 %v626
    %v709 = vpop.f32.mrb[0].mxu0
    %v710 = vadd.f32 0.0, %v709
    %v711 = vpop.f32.mrb[0].mxu0
    %712 = vdwg.mxu0
    %v714 = vsel %vm57, %v402, 0
    %v717 = vsel %vm57, %v407, 0
    %v720 = vsel %vm57, %v412, 0
    %v723 = vsel %vm57, %v417, 0
    %725 = vmatprep.subr.mxu0 0.0
    %726 = vmatpush1.msra.mxu0 %v580
    %727 = vmatprep.subr.mxu0 0.0
    %728 = vmatpush1.msra.mxu0 %v581
    %729 = vmatprep.subr.mxu0 0.0
    %730 = vmatpush1.msra.mxu0 %v582
    %731 = vmatprep.subr.mxu0 0.0
    %732 = vmatpush1.msra.mxu0 %v583
    %733 = vmatprep.subr.mxu0 0.0
    %734 = vmatpush1.msra.mxu0 0.0
    %735 = vmatprep.subr.mxu0 0.0
    %736 = vmatpush1.msra.mxu0 0.0
    %737 = vmatprep.subr.mxu0 0.0
    %738 = vmatpush1.msra.mxu0 0.0
    %739 = vmatprep.subr.mxu0 0.0
    %740 = vmatpush1.msra.mxu0 0.0
    %741 = vmatprep.subr.mxu0 0.0
    %742 = vmatpush1.msra.mxu0 0.0
    %743 = vmatprep.subr.mxu0 0.0
    %744 = vmatpush1.msra.mxu0 0.0
    %745 = vmatprep.subr.mxu0 0.0
    %746 = vmatpush1.msra.mxu0 0.0
    %747 = vmatprep.subr.mxu0 0.0
    %748 = vmatpush1.msra.mxu0 0.0
    %749 = vmatprep.subr.mxu0 0.0
    %750 = vmatpush1.msra.mxu0 0.0
    %751 = vmatprep.subr.mxu0 0.0
    %752 = vmatpush1.msra.mxu0 0.0
    %753 = vmatprep.subr.mxu0 0.0
    %754 = vmatpush1.msra.mxu0 0.0
    %755 = vmatprep.subr.mxu0 0.0
    %756 = vmatpush1.msra.mxu0 0.0
    %757 = vmatprep.subr.mxu0 0.0
    %758 = vmatpush1.msra.mxu0 0.0
    %759 = vmatprep.subr.mxu0 0.0
    %760 = vmatpush1.msra.mxu0 0.0
    %761 = vmatprep.subr.mxu0 0.0
    %762 = vmatpush1.msra.mxu0 0.0
    %763 = vmatprep.subr.mxu0 0.0
    %764 = vmatpush1.msra.mxu0 0.0
    %765 = vmatprep.subr.mxu0 0.0
    %766 = vmatpush1.msra.mxu0 0.0
    %767 = vmatprep.subr.mxu0 0.0
    %768 = vmatpush1.msra.mxu0 0.0
    %769 = vmatprep.subr.mxu0 0.0
    %770 = vmatpush1.msra.mxu0 0.0
    %771 = vmatprep.subr.mxu0 0.0
    %772 = vmatpush1.msra.mxu0 0.0
    %773 = vmatprep.subr.mxu0 0.0
    %774 = vmatpush1.msra.mxu0 0.0
    %775 = vmatprep.subr.mxu0 0.0
    %776 = vmatpush1.msra.mxu0 0.0
    %777 = vmatprep.subr.mxu0 0.0
    %778 = vmatpush1.msra.mxu0 0.0
    %779 = vmatprep.subr.mxu0 0.0
    %780 = vmatpush1.msra.mxu0 0.0
    %781 = vmatprep.subr.mxu0 0.0
    %782 = vmatpush1.msra.mxu0 0.0
    %783 = vmatprep.subr.mxu0 0.0
    %784 = vmatpush1.msra.mxu0 0.0
    %785 = vmatprep.subr.mxu0 0.0
    %786 = vmatpush1.msra.mxu0 0.0
    %787 = vmatprep.subr.mxu0 0.0
    %788 = vmatpush1.msra.mxu0 0.0
    %789 = vmatprep.mubr.f32.mxu0 0.0
    %790 = vmatmul.mubr.f32.gmra.mrb[0].mxu0 %v714
    %v791 = vpop.f32.mrb[0].mxu0
    %v792 = vadd.f32 %v695, %v791
    %v793 = vpop.f32.mrb[0].mxu0
    %794 = vmatprep.mubr.f32.mxu0 0.0
    %795 = vmatmul.mubr.f32.gmra.mrb[0].mxu0 %v717
    %v796 = vpop.f32.mrb[0].mxu0
    %v797 = vadd.f32 %v700, %v796
    %v798 = vpop.f32.mrb[0].mxu0
    %799 = vmatprep.mubr.f32.mxu0 0.0
    %800 = vmatmul.mubr.f32.gmra.mrb[0].mxu0 %v720
    %v801 = vpop.f32.mrb[0].mxu0
    %v802 = vadd.f32 %v705, %v801
    %v803 = vpop.f32.mrb[0].mxu0
    %804 = vmatprep.mubr.f32.mxu0 0.0
    %805 = vmatmul.mubr.f32.gmra.mrb[0].mxu0 %v723
    %v806 = vpop.f32.mrb[0].mxu0
    %v807 = vadd.f32 %v710, %v806
    %v808 = vpop.f32.mrb[0].mxu0
    %809 = vdwg.mxu0
    %v811 = vsel %vm57, %v442, 0
    %v814 = vsel %vm57, %v447, 0
    %v817 = vsel %vm57, %v452, 0
    %v820 = vsel %vm57, %v457, 0
    %822 = vmatprep.subr.mxu0 0.0
    %823 = vmatpush1.msra.mxu0 %v588
    %824 = vmatprep.subr.mxu0 0.0
    %825 = vmatpush1.msra.mxu0 %v589
    %826 = vmatprep.subr.mxu0 0.0
    %827 = vmatpush1.msra.mxu0 %v590
    %828 = vmatprep.subr.mxu0 0.0
    %829 = vmatpush1.msra.mxu0 %v591
    %830 = vmatprep.subr.mxu0 0.0
    %831 = vmatpush1.msra.mxu0 0.0
    %832 = vmatprep.subr.mxu0 0.0
    %833 = vmatpush1.msra.mxu0 0.0
    %834 = vmatprep.subr.mxu0 0.0
    %835 = vmatpush1.msra.mxu0 0.0
    %836 = vmatprep.subr.mxu0 0.0
    %837 = vmatpush1.msra.mxu0 0.0
    %838 = vmatprep.subr.mxu0 0.0
    %839 = vmatpush1.msra.mxu0 0.0
    %840 = vmatprep.subr.mxu0 0.0
    %841 = vmatpush1.msra.mxu0 0.0
    %842 = vmatprep.subr.mxu0 0.0
    %843 = vmatpush1.msra.mxu0 0.0
    %844 = vmatprep.subr.mxu0 0.0
    %845 = vmatpush1.msra.mxu0 0.0
    %846 = vmatprep.subr.mxu0 0.0
    %847 = vmatpush1.msra.mxu0 0.0
    %848 = vmatprep.subr.mxu0 0.0
    %849 = vmatpush1.msra.mxu0 0.0
    %850 = vmatprep.subr.mxu0 0.0
    %851 = vmatpush1.msra.mxu0 0.0
    %852 = vmatprep.subr.mxu0 0.0
    %853 = vmatpush1.msra.mxu0 0.0
    %854 = vmatprep.subr.mxu0 0.0
    %855 = vmatpush1.msra.mxu0 0.0
    %856 = vmatprep.subr.mxu0 0.0
    %857 = vmatpush1.msra.mxu0 0.0
    %858 = vmatprep.subr.mxu0 0.0
    %859 = vmatpush1.msra.mxu0 0.0
    %860 = vmatprep.subr.mxu0 0.0
    %861 = vmatpush1.msra.mxu0 0.0
    %862 = vmatprep.subr.mxu0 0.0
    %863 = vmatpush1.msra.mxu0 0.0
    %864 = vmatprep.subr.mxu0 0.0
    %865 = vmatpush1.msra.mxu0 0.0
    %866 = vmatprep.subr.mxu0 0.0
    %867 = vmatpush1.msra.mxu0 0.0
    %868 = vmatprep.subr.mxu0 0.0
    %869 = vmatpush1.msra.mxu0 0.0
    %870 = vmatprep.subr.mxu0 0.0
    %871 = vmatpush1.msra.mxu0 0.0
    %872 = vmatprep.subr.mxu0 0.0
    %873 = vmatpush1.msra.mxu0 0.0
    %874 = vmatprep.subr.mxu0 0.0
    %875 = vmatpush1.msra.mxu0 0.0
    %876 = vmatprep.subr.mxu0 0.0
    %877 = vmatpush1.msra.mxu0 0.0
    %878 = vmatprep.subr.mxu0 0.0
    %879 = vmatpush1.msra.mxu0 0.0
    %880 = vmatprep.subr.mxu0 0.0
    %881 = vmatpush1.msra.mxu0 0.0
    %882 = vmatprep.subr.mxu0 0.0
    %883 = vmatpush1.msra.mxu0 0.0
    %884 = vmatprep.subr.mxu0 0.0
    %885 = vmatpush1.msra.mxu0 0.0
    %886 = vmatprep.mubr.f32.mxu0 0.0
    %887 = vmatmul.mubr.f32.gmra.mrb[0].mxu0 %v811
    %v888 = vpop.f32.mrb[0].mxu0
    %v889 = vadd.f32 0.0, %v888
    %v890 = vpop.f32.mrb[0].mxu0
    %891 = vmatprep.mubr.f32.mxu0 0.0
    %892 = vmatmul.mubr.f32.gmra.mrb[0].mxu0 %v814
    %v893 = vpop.f32.mrb[0].mxu0
    %v894 = vadd.f32 0.0, %v893
    %v895 = vpop.f32.mrb[0].mxu0
    %896 = vmatprep.mubr.f32.mxu0 0.0
    %897 = vmatmul.mubr.f32.gmra.mrb[0].mxu0 %v817
    %v898 = vpop.f32.mrb[0].mxu0
    %v899 = vadd.f32 0.0, %v898
    %v900 = vpop.f32.mrb[0].mxu0
    %901 = vmatprep.mubr.f32.mxu0 0.0
    %902 = vmatmul.mubr.f32.gmra.mrb[0].mxu0 %v820
    %v903 = vpop.f32.mrb[0].mxu0
    %v904 = vadd.f32 0.0, %v903
    %v905 = vpop.f32.mrb[0].mxu0
    %906 = vdwg.mxu0
    %v907 = vadd.f32 %v792, %v889
    %v908 = vadd.f32 %v797, %v894
    %v909 = vadd.f32 %v802, %v899
    %v910 = vadd.f32 %v807, %v904
    %v912 = vsel %vm57, %v462, 0
    %v915 = vsel %vm57, %v467, 0
    %v918 = vsel %vm57, %v472, 0
    %v921 = vsel %vm57, %v477, 0
    %923 = vmatprep.subr.mxu0 0.0
    %924 = vmatpush1.msra.mxu0 %v592
    %925 = vmatprep.subr.mxu0 0.0
    %926 = vmatpush1.msra.mxu0 %v593
    %927 = vmatprep.subr.mxu0 0.0
    %928 = vmatpush1.msra.mxu0 %v594
    %929 = vmatprep.subr.mxu0 0.0
    %930 = vmatpush1.msra.mxu0 %v595
    %931 = vmatprep.subr.mxu0 0.0
    %932 = vmatpush1.msra.mxu0 0.0
    %933 = vmatprep.subr.mxu0 0.0
    %934 = vmatpush1.msra.mxu0 0.0
    %935 = vmatprep.subr.mxu0 0.0
    %936 = vmatpush1.msra.mxu0 0.0
    %937 = vmatprep.subr.mxu0 0.0
    %938 = vmatpush1.msra.mxu0 0.0
    %939 = vmatprep.subr.mxu0 0.0
    %940 = vmatpush1.msra.mxu0 0.0
    %941 = vmatprep.subr.mxu0 0.0
    %942 = vmatpush1.msra.mxu0 0.0
    %943 = vmatprep.subr.mxu0 0.0
    %944 = vmatpush1.msra.mxu0 0.0
    %945 = vmatprep.subr.mxu0 0.0
    %946 = vmatpush1.msra.mxu0 0.0
    %947 = vmatprep.subr.mxu0 0.0
    %948 = vmatpush1.msra.mxu0 0.0
    %949 = vmatprep.subr.mxu0 0.0
    %950 = vmatpush1.msra.mxu0 0.0
    %951 = vmatprep.subr.mxu0 0.0
    %952 = vmatpush1.msra.mxu0 0.0
    %953 = vmatprep.subr.mxu0 0.0
    %954 = vmatpush1.msra.mxu0 0.0
    %955 = vmatprep.subr.mxu0 0.0
    %956 = vmatpush1.msra.mxu0 0.0
    %957 = vmatprep.subr.mxu0 0.0
    %958 = vmatpush1.msra.mxu0 0.0
    %959 = vmatprep.subr.mxu0 0.0
    %960 = vmatpush1.msra.mxu0 0.0
    %961 = vmatprep.subr.mxu0 0.0
    %962 = vmatpush1.msra.mxu0 0.0
    %963 = vmatprep.subr.mxu0 0.0
    %964 = vmatpush1.msra.mxu0 0.0
    %965 = vmatprep.subr.mxu0 0.0
    %966 = vmatpush1.msra.mxu0 0.0
    %967 = vmatprep.subr.mxu0 0.0
    %968 = vmatpush1.msra.mxu0 0.0
    %969 = vmatprep.subr.mxu0 0.0
    %970 = vmatpush1.msra.mxu0 0.0
    %971 = vmatprep.subr.mxu0 0.0
    %972 = vmatpush1.msra.mxu0 0.0
    %973 = vmatprep.subr.mxu0 0.0
    %974 = vmatpush1.msra.mxu0 0.0
    %975 = vmatprep.subr.mxu0 0.0
    %976 = vmatpush1.msra.mxu0 0.0
    %977 = vmatprep.subr.mxu0 0.0
    %978 = vmatpush1.msra.mxu0 0.0
    %979 = vmatprep.subr.mxu0 0.0
    %980 = vmatpush1.msra.mxu0 0.0
    %981 = vmatprep.subr.mxu0 0.0
    %982 = vmatpush1.msra.mxu0 0.0
    %983 = vmatprep.subr.mxu0 0.0
    %984 = vmatpush1.msra.mxu0 0.0
    %985 = vmatprep.subr.mxu0 0.0
    %986 = vmatpush1.msra.mxu0 0.0
    %987 = vmatprep.mubr.f32.mxu0 0.0
    %988 = vmatmul.mubr.f32.gmra.mrb[0].mxu0 %v912
    %v989 = vpop.f32.mrb[0].mxu0
    %v990 = vadd.f32 0.0, %v989
    %v991 = vpop.f32.mrb[0].mxu0
    %992 = vmatprep.mubr.f32.mxu0 0.0
    %993 = vmatmul.mubr.f32.gmra.mrb[0].mxu0 %v915
    %v994 = vpop.f32.mrb[0].mxu0
    %v995 = vadd.f32 0.0, %v994
    %v996 = vpop.f32.mrb[0].mxu0
    %997 = vmatprep.mubr.f32.mxu0 0.0
    %998 = vmatmul.mubr.f32.gmra.mrb[0].mxu0 %v918
    %v999 = vpop.f32.mrb[0].mxu0
    %v1000 = vadd.f32 0.0, %v999
    %v1001 = vpop.f32.mrb[0].mxu0
    %1002 = vmatprep.mubr.f32.mxu0 0.0
    %1003 = vmatmul.mubr.f32.gmra.mrb[0].mxu0 %v921
    %v1004 = vpop.f32.mrb[0].mxu0
    %v1005 = vadd.f32 0.0, %v1004
    %v1006 = vpop.f32.mrb[0].mxu0
    %1007 = vdwg.mxu0
    %v1008 = vadd.f32 %v907, %v990
    %v1009 = vadd.f32 %v908, %v995
    %v1010 = vadd.f32 %v909, %v1000
    %v1011 = vadd.f32 %v910, %v1005
    %v1013 = vsel %vm57, %v482, 0
    %v1016 = vsel %vm57, %v487, 0
    %v1019 = vsel %vm57, %v492, 0
    %v1022 = vsel %vm57, %v497, 0
    %1024 = vmatprep.subr.mxu0 0.0
    %1025 = vmatpush1.msra.mxu0 %v596
    %1026 = vmatprep.subr.mxu0 0.0
    %1027 = vmatpush1.msra.mxu0 %v597
    %1028 = vmatprep.subr.mxu0 0.0
    %1029 = vmatpush1.msra.mxu0 %v598
    %1030 = vmatprep.subr.mxu0 0.0
    %1031 = vmatpush1.msra.mxu0 %v599
    %1032 = vmatprep.subr.mxu0 0.0
    %1033 = vmatpush1.msra.mxu0 0.0
    %1034 = vmatprep.subr.mxu0 0.0
    %1035 = vmatpush1.msra.mxu0 0.0
    %1036 = vmatprep.subr.mxu0 0.0
    %1037 = vmatpush1.msra.mxu0 0.0
    %1038 = vmatprep.subr.mxu0 0.0
    %1039 = vmatpush1.msra.mxu0 0.0
    %1040 = vmatprep.subr.mxu0 0.0
    %1041 = vmatpush1.msra.mxu0 0.0
    %1042 = vmatprep.subr.mxu0 0.0
    %1043 = vmatpush1.msra.mxu0 0.0
    %1044 = vmatprep.subr.mxu0 0.0
    %1045 = vmatpush1.msra.mxu0 0.0
    %1046 = vmatprep.subr.mxu0 0.0
    %1047 = vmatpush1.msra.mxu0 0.0
    %1048 = vmatprep.subr.mxu0 0.0
    %1049 = vmatpush1.msra.mxu0 0.0
    %1050 = vmatprep.subr.mxu0 0.0
    %1051 = vmatpush1.msra.mxu0 0.0
    %1052 = vmatprep.subr.mxu0 0.0
    %1053 = vmatpush1.msra.mxu0 0.0
    %1054 = vmatprep.subr.mxu0 0.0
    %1055 = vmatpush1.msra.mxu0 0.0
    %1056 = vmatprep.subr.mxu0 0.0
    %1057 = vmatpush1.msra.mxu0 0.0
    %1058 = vmatprep.subr.mxu0 0.0
    %1059 = vmatpush1.msra.mxu0 0.0
    %1060 = vmatprep.subr.mxu0 0.0
    %1061 = vmatpush1.msra.mxu0 0.0
    %1062 = vmatprep.subr.mxu0 0.0
    %1063 = vmatpush1.msra.mxu0 0.0
    %1064 = vmatprep.subr.mxu0 0.0
    %1065 = vmatpush1.msra.mxu0 0.0
    %1066 = vmatprep.subr.mxu0 0.0
    %1067 = vmatpush1.msra.mxu0 0.0
    %1068 = vmatprep.subr.mxu0 0.0
    %1069 = vmatpush1.msra.mxu0 0.0
    %1070 = vmatprep.subr.mxu0 0.0
    %1071 = vmatpush1.msra.mxu0 0.0
    %1072 = vmatprep.subr.mxu0 0.0
    %1073 = vmatpush1.msra.mxu0 0.0
    %1074 = vmatprep.subr.mxu0 0.0
    %1075 = vmatpush1.msra.mxu0 0.0
    %1076 = vmatprep.subr.mxu0 0.0
    %1077 = vmatpush1.msra.mxu0 0.0
    %1078 = vmatprep.subr.mxu0 0.0
    %1079 = vmatpush1.msra.mxu0 0.0
    %1080 = vmatprep.subr.mxu0 0.0
    %1081 = vmatpush1.msra.mxu0 0.0
    %1082 = vmatprep.subr.mxu0 0.0
    %1083 = vmatpush1.msra.mxu0 0.0
    %1084 = vmatprep.subr.mxu0 0.0
    %1085 = vmatpush1.msra.mxu0 0.0
    %1086 = vmatprep.subr.mxu0 0.0
    %1087 = vmatpush1.msra.mxu0 0.0
    %1088 = vmatprep.mubr.f32.mxu0 0.0
    %1089 = vmatmul.mubr.f32.gmra.mrb[0].mxu0 %v1013
    %v1090 = vpop.f32.mrb[0].mxu0
    %v1091 = vadd.f32 0.0, %v1090
    %v1092 = vpop.f32.mrb[0].mxu0
    %1093 = vmatprep.mubr.f32.mxu0 0.0
    %1094 = vmatmul.mubr.f32.gmra.mrb[0].mxu0 %v1016
    %v1095 = vpop.f32.mrb[0].mxu0
    %v1096 = vadd.f32 0.0, %v1095
    %v1097 = vpop.f32.mrb[0].mxu0
    %1098 = vmatprep.mubr.f32.mxu0 0.0
    %1099 = vmatmul.mubr.f32.gmra.mrb[0].mxu0 %v1019
    %v1100 = vpop.f32.mrb[0].mxu0
    %v1101 = vadd.f32 0.0, %v1100
    %v1102 = vpop.f32.mrb[0].mxu0
    %1103 = vmatprep.mubr.f32.mxu0 0.0
    %1104 = vmatmul.mubr.f32.gmra.mrb[0].mxu0 %v1022
    %v1105 = vpop.f32.mrb[0].mxu0
    %v1106 = vadd.f32 0.0, %v1105
    %v1107 = vpop.f32.mrb[0].mxu0
    %1108 = vdwg.mxu0
    %v1109 = vadd.f32 %v1008, %v1091
    %v1110 = vadd.f32 %v1009, %v1096
    %v1111 = vadd.f32 %v1010, %v1101
    %v1112 = vadd.f32 %v1011, %v1106
    %v1114 = vsel %vm57, %v502, 0
    %v1117 = vsel %vm57, %v507, 0
    %v1120 = vsel %vm57, %v512, 0
    %v1123 = vsel %vm57, %v517, 0
    %1125 = vmatprep.subr.mxu0 0.0
    %1126 = vmatpush1.msra.mxu0 %v600
    %1127 = vmatprep.subr.mxu0 0.0
    %1128 = vmatpush1.msra.mxu0 %v601
    %1129 = vmatprep.subr.mxu0 0.0
    %1130 = vmatpush1.msra.mxu0 %v602
    %1131 = vmatprep.subr.mxu0 0.0
    %1132 = vmatpush1.msra.mxu0 %v603
    %1133 = vmatprep.subr.mxu0 0.0
    %1134 = vmatpush1.msra.mxu0 0.0
    %1135 = vmatprep.subr.mxu0 0.0
    %1136 = vmatpush1.msra.mxu0 0.0
    %1137 = vmatprep.subr.mxu0 0.0
    %1138 = vmatpush1.msra.mxu0 0.0
    %1139 = vmatprep.subr.mxu0 0.0
    %1140 = vmatpush1.msra.mxu0 0.0
    %1141 = vmatprep.subr.mxu0 0.0
    %1142 = vmatpush1.msra.mxu0 0.0
    %1143 = vmatprep.subr.mxu0 0.0
    %1144 = vmatpush1.msra.mxu0 0.0
    %1145 = vmatprep.subr.mxu0 0.0
    %1146 = vmatpush1.msra.mxu0 0.0
    %1147 = vmatprep.subr.mxu0 0.0
    %1148 = vmatpush1.msra.mxu0 0.0
    %1149 = vmatprep.subr.mxu0 0.0
    %1150 = vmatpush1.msra.mxu0 0.0
    %1151 = vmatprep.subr.mxu0 0.0
    %1152 = vmatpush1.msra.mxu0 0.0
    %1153 = vmatprep.subr.mxu0 0.0
    %1154 = vmatpush1.msra.mxu0 0.0
    %1155 = vmatprep.subr.mxu0 0.0
    %1156 = vmatpush1.msra.mxu0 0.0
    %1157 = vmatprep.subr.mxu0 0.0
    %1158 = vmatpush1.msra.mxu0 0.0
    %1159 = vmatprep.subr.mxu0 0.0
    %1160 = vmatpush1.msra.mxu0 0.0
    %1161 = vmatprep.subr.mxu0 0.0
    %1162 = vmatpush1.msra.mxu0 0.0
    %1163 = vmatprep.subr.mxu0 0.0
    %1164 = vmatpush1.msra.mxu0 0.0
    %1165 = vmatprep.subr.mxu0 0.0
    %1166 = vmatpush1.msra.mxu0 0.0
    %1167 = vmatprep.subr.mxu0 0.0
    %1168 = vmatpush1.msra.mxu0 0.0
    %1169 = vmatprep.subr.mxu0 0.0
    %1170 = vmatpush1.msra.mxu0 0.0
    %1171 = vmatprep.subr.mxu0 0.0
    %1172 = vmatpush1.msra.mxu0 0.0
    %1173 = vmatprep.subr.mxu0 0.0
    %1174 = vmatpush1.msra.mxu0 0.0
    %1175 = vmatprep.subr.mxu0 0.0
    %1176 = vmatpush1.msra.mxu0 0.0
    %1177 = vmatprep.subr.mxu0 0.0
    %1178 = vmatpush1.msra.mxu0 0.0
    %1179 = vmatprep.subr.mxu0 0.0
    %1180 = vmatpush1.msra.mxu0 0.0
    %1181 = vmatprep.subr.mxu0 0.0
    %1182 = vmatpush1.msra.mxu0 0.0
    %1183 = vmatprep.subr.mxu0 0.0
    %1184 = vmatpush1.msra.mxu0 0.0
    %1185 = vmatprep.subr.mxu0 0.0
    %1186 = vmatpush1.msra.mxu0 0.0
    %1187 = vmatprep.subr.mxu0 0.0
    %1188 = vmatpush1.msra.mxu0 0.0
    %1189 = vmatprep.mubr.f32.mxu0 0.0
    %1190 = vmatmul.mubr.f32.gmra.mrb[0].mxu0 %v1114
    %v1191 = vpop.f32.mrb[0].mxu0
    %v1192 = vadd.f32 0.0, %v1191
    %v1193 = vpop.f32.mrb[0].mxu0
    %1194 = vmatprep.mubr.f32.mxu0 0.0
    %1195 = vmatmul.mubr.f32.gmra.mrb[0].mxu0 %v1117
    %v1196 = vpop.f32.mrb[0].mxu0
    %v1197 = vadd.f32 0.0, %v1196
    %v1198 = vpop.f32.mrb[0].mxu0
    %1199 = vmatprep.mubr.f32.mxu0 0.0
    %1200 = vmatmul.mubr.f32.gmra.mrb[0].mxu0 %v1120
    %v1201 = vpop.f32.mrb[0].mxu0
    %v1202 = vadd.f32 0.0, %v1201
    %v1203 = vpop.f32.mrb[0].mxu0
    %1204 = vmatprep.mubr.f32.mxu0 0.0
    %1205 = vmatmul.mubr.f32.gmra.mrb[0].mxu0 %v1123
    %v1206 = vpop.f32.mrb[0].mxu0
    %v1207 = vadd.f32 0.0, %v1206
    %v1208 = vpop.f32.mrb[0].mxu0
    %1209 = vdwg.mxu0
    %v1210 = vadd.f32 %v1109, %v1192
    %v1211 = vadd.f32 %v1110, %v1197
    %v1212 = vadd.f32 %v1111, %v1202
    %v1213 = vadd.f32 %v1112, %v1207
    %v1215 = vsel %vm57, %v522, 0
    %v1218 = vsel %vm57, %v527, 0
    %v1221 = vsel %vm57, %v532, 0
    %v1224 = vsel %vm57, %v537, 0
    %1226 = vmatprep.subr.mxu0 0.0
    %1227 = vmatpush1.msra.mxu0 %v604
    %1228 = vmatprep.subr.mxu0 0.0
    %1229 = vmatpush1.msra.mxu0 %v605
    %1230 = vmatprep.subr.mxu0 0.0
    %1231 = vmatpush1.msra.mxu0 %v606
    %1232 = vmatprep.subr.mxu0 0.0
    %1233 = vmatpush1.msra.mxu0 %v607
    %1234 = vmatprep.subr.mxu0 0.0
    %1235 = vmatpush1.msra.mxu0 0.0
    %1236 = vmatprep.subr.mxu0 0.0
    %1237 = vmatpush1.msra.mxu0 0.0
    %1238 = vmatprep.subr.mxu0 0.0
    %1239 = vmatpush1.msra.mxu0 0.0
    %1240 = vmatprep.subr.mxu0 0.0
    %1241 = vmatpush1.msra.mxu0 0.0
    %1242 = vmatprep.subr.mxu0 0.0
    %1243 = vmatpush1.msra.mxu0 0.0
    %1244 = vmatprep.subr.mxu0 0.0
    %1245 = vmatpush1.msra.mxu0 0.0
    %1246 = vmatprep.subr.mxu0 0.0
    %1247 = vmatpush1.msra.mxu0 0.0
    %1248 = vmatprep.subr.mxu0 0.0
    %1249 = vmatpush1.msra.mxu0 0.0
    %1250 = vmatprep.subr.mxu0 0.0
    %1251 = vmatpush1.msra.mxu0 0.0
    %1252 = vmatprep.subr.mxu0 0.0
    %1253 = vmatpush1.msra.mxu0 0.0
    %1254 = vmatprep.subr.mxu0 0.0
    %1255 = vmatpush1.msra.mxu0 0.0
    %1256 = vmatprep.subr.mxu0 0.0
    %1257 = vmatpush1.msra.mxu0 0.0
    %1258 = vmatprep.subr.mxu0 0.0
    %1259 = vmatpush1.msra.mxu0 0.0
    %1260 = vmatprep.subr.mxu0 0.0
    %1261 = vmatpush1.msra.mxu0 0.0
    %1262 = vmatprep.subr.mxu0 0.0
    %1263 = vmatpush1.msra.mxu0 0.0
    %1264 = vmatprep.subr.mxu0 0.0
    %1265 = vmatpush1.msra.mxu0 0.0
    %1266 = vmatprep.subr.mxu0 0.0
    %1267 = vmatpush1.msra.mxu0 0.0
    %1268 = vmatprep.subr.mxu0 0.0
    %1269 = vmatpush1.msra.mxu0 0.0
    %1270 = vmatprep.subr.mxu0 0.0
    %1271 = vmatpush1.msra.mxu0 0.0
    %1272 = vmatprep.subr.mxu0 0.0
    %1273 = vmatpush1.msra.mxu0 0.0
    %1274 = vmatprep.subr.mxu0 0.0
    %1275 = vmatpush1.msra.mxu0 0.0
    %1276 = vmatprep.subr.mxu0 0.0
    %1277 = vmatpush1.msra.mxu0 0.0
    %1278 = vmatprep.subr.mxu0 0.0
    %1279 = vmatpush1.msra.mxu0 0.0
    %1280 = vmatprep.subr.mxu0 0.0
    %1281 = vmatpush1.msra.mxu0 0.0
    %1282 = vmatprep.subr.mxu0 0.0
    %1283 = vmatpush1.msra.mxu0 0.0
    %1284 = vmatprep.subr.mxu0 0.0
    %1285 = vmatpush1.msra.mxu0 0.0
    %1286 = vmatprep.subr.mxu0 0.0
    %1287 = vmatpush1.msra.mxu0 0.0
    %1288 = vmatprep.subr.mxu0 0.0
    %1289 = vmatpush1.msra.mxu0 0.0
    %1290 = vmatprep.mubr.f32.mxu0 0.0
    %1291 = vmatmul.mubr.f32.gmra.mrb[0].mxu0 %v1215
    %v1292 = vpop.f32.mrb[0].mxu0
    %v1293 = vadd.f32 0.0, %v1292
    %v1294 = vpop.f32.mrb[0].mxu0
    %1295 = vmatprep.mubr.f32.mxu0 0.0
    %1296 = vmatmul.mubr.f32.gmra.mrb[0].mxu0 %v1218
    %v1297 = vpop.f32.mrb[0].mxu0
    %v1298 = vadd.f32 0.0, %v1297
    %v1299 = vpop.f32.mrb[0].mxu0
    %1300 = vmatprep.mubr.f32.mxu0 0.0
    %1301 = vmatmul.mubr.f32.gmra.mrb[0].mxu0 %v1221
    %v1302 = vpop.f32.mrb[0].mxu0
    %v1303 = vadd.f32 0.0, %v1302
    %v1304 = vpop.f32.mrb[0].mxu0
    %1305 = vmatprep.mubr.f32.mxu0 0.0
    %1306 = vmatmul.mubr.f32.gmra.mrb[0].mxu0 %v1224
    %v1307 = vpop.f32.mrb[0].mxu0
    %v1308 = vadd.f32 0.0, %v1307
    %v1309 = vpop.f32.mrb[0].mxu0
    %1310 = vdwg.mxu0
    %v1311 = vadd.f32 %v1210, %v1293
    %v1312 = vadd.f32 %v1211, %v1298
    %v1313 = vadd.f32 %v1212, %v1303
    %v1314 = vadd.f32 %v1213, %v1308
    %v1316 = vsel %vm57, %v542, 0
    %v1319 = vsel %vm57, %v547, 0
    %v1322 = vsel %vm57, %v552, 0
    %v1325 = vsel %vm57, %v557, 0
    %1327 = vmatprep.subr.mxu0 0.0
    %1328 = vmatpush1.msra.mxu0 %v608
    %1329 = vmatprep.subr.mxu0 0.0
    %1330 = vmatpush1.msra.mxu0 %v609
    %1331 = vmatprep.subr.mxu0 0.0
    %1332 = vmatpush1.msra.mxu0 %v610
    %1333 = vmatprep.subr.mxu0 0.0
    %1334 = vmatpush1.msra.mxu0 %v611
    %1335 = vmatprep.subr.mxu0 0.0
    %1336 = vmatpush1.msra.mxu0 0.0
    %1337 = vmatprep.subr.mxu0 0.0
    %1338 = vmatpush1.msra.mxu0 0.0
    %1339 = vmatprep.subr.mxu0 0.0
    %1340 = vmatpush1.msra.mxu0 0.0
    %1341 = vmatprep.subr.mxu0 0.0
    %1342 = vmatpush1.msra.mxu0 0.0
    %1343 = vmatprep.subr.mxu0 0.0
    %1344 = vmatpush1.msra.mxu0 0.0
    %1345 = vmatprep.subr.mxu0 0.0
    %1346 = vmatpush1.msra.mxu0 0.0
    %1347 = vmatprep.subr.mxu0 0.0
    %1348 = vmatpush1.msra.mxu0 0.0
    %1349 = vmatprep.subr.mxu0 0.0
    %1350 = vmatpush1.msra.mxu0 0.0
    %1351 = vmatprep.subr.mxu0 0.0
    %1352 = vmatpush1.msra.mxu0 0.0
    %1353 = vmatprep.subr.mxu0 0.0
    %1354 = vmatpush1.msra.mxu0 0.0
    %1355 = vmatprep.subr.mxu0 0.0
    %1356 = vmatpush1.msra.mxu0 0.0
    %1357 = vmatprep.subr.mxu0 0.0
    %1358 = vmatpush1.msra.mxu0 0.0
    %1359 = vmatprep.subr.mxu0 0.0
    %1360 = vmatpush1.msra.mxu0 0.0
    %1361 = vmatprep.subr.mxu0 0.0
    %1362 = vmatpush1.msra.mxu0 0.0
    %1363 = vmatprep.subr.mxu0 0.0
    %1364 = vmatpush1.msra.mxu0 0.0
    %1365 = vmatprep.subr.mxu0 0.0
    %1366 = vmatpush1.msra.mxu0 0.0
    %1367 = vmatprep.subr.mxu0 0.0
    %1368 = vmatpush1.msra.mxu0 0.0
    %1369 = vmatprep.subr.mxu0 0.0
    %1370 = vmatpush1.msra.mxu0 0.0
    %1371 = vmatprep.subr.mxu0 0.0
    %1372 = vmatpush1.msra.mxu0 0.0
    %1373 = vmatprep.subr.mxu0 0.0
    %1374 = vmatpush1.msra.mxu0 0.0
    %1375 = vmatprep.subr.mxu0 0.0
    %1376 = vmatpush1.msra.mxu0 0.0
    %1377 = vmatprep.subr.mxu0 0.0
    %1378 = vmatpush1.msra.mxu0 0.0
    %1379 = vmatprep.subr.mxu0 0.0
    %1380 = vmatpush1.msra.mxu0 0.0
    %1381 = vmatprep.subr.mxu0 0.0
    %1382 = vmatpush1.msra.mxu0 0.0
    %1383 = vmatprep.subr.mxu0 0.0
    %1384 = vmatpush1.msra.mxu0 0.0
    %1385 = vmatprep.subr.mxu0 0.0
    %1386 = vmatpush1.msra.mxu0 0.0
    %1387 = vmatprep.subr.mxu0 0.0
    %1388 = vmatpush1.msra.mxu0 0.0
    %1389 = vmatprep.subr.mxu0 0.0
    %1390 = vmatpush1.msra.mxu0 0.0
    %1391 = vmatprep.mubr.f32.mxu0 0.0
    %1392 = vmatmul.mubr.f32.gmra.mrb[0].mxu0 %v1316
    %v1393 = vpop.f32.mrb[0].mxu0
    %v1394 = vadd.f32 0.0, %v1393
    %v1395 = vpop.f32.mrb[0].mxu0
    %1396 = vmatprep.mubr.f32.mxu0 0.0
    %1397 = vmatmul.mubr.f32.gmra.mrb[0].mxu0 %v1319
    %v1398 = vpop.f32.mrb[0].mxu0
    %v1399 = vadd.f32 0.0, %v1398
    %v1400 = vpop.f32.mrb[0].mxu0
    %1401 = vmatprep.mubr.f32.mxu0 0.0
    %1402 = vmatmul.mubr.f32.gmra.mrb[0].mxu0 %v1322
    %v1403 = vpop.f32.mrb[0].mxu0
    %v1404 = vadd.f32 0.0, %v1403
    %v1405 = vpop.f32.mrb[0].mxu0
    %1406 = vmatprep.mubr.f32.mxu0 0.0
    %1407 = vmatmul.mubr.f32.gmra.mrb[0].mxu0 %v1325
    %v1408 = vpop.f32.mrb[0].mxu0
    %v1409 = vadd.f32 0.0, %v1408
    %v1410 = vpop.f32.mrb[0].mxu0
    %1411 = vdwg.mxu0
    %v1412 = vadd.f32 %v1311, %v1394
    %v1413 = vadd.f32 %v1312, %v1399
    %v1414 = vadd.f32 %v1313, %v1404
    %v1415 = vadd.f32 %v1314, %v1409
    %v1417 = vsel %vm57, %v562, 0
    %v1420 = vsel %vm57, %v567, 0
    %v1423 = vsel %vm57, %v572, 0
    %v1426 = vsel %vm57, %v577, 0
    %1428 = vmatprep.subr.mxu0 0.0
    %1429 = vmatpush1.msra.mxu0 %v612
    %1430 = vmatprep.subr.mxu0 0.0
    %1431 = vmatpush1.msra.mxu0 %v613
    %1432 = vmatprep.subr.mxu0 0.0
    %1433 = vmatpush1.msra.mxu0 %v614
    %1434 = vmatprep.subr.mxu0 0.0
    %1435 = vmatpush1.msra.mxu0 %v615
    %1436 = vmatprep.subr.mxu0 0.0
    %1437 = vmatpush1.msra.mxu0 0.0
    %1438 = vmatprep.subr.mxu0 0.0
    %1439 = vmatpush1.msra.mxu0 0.0
    %1440 = vmatprep.subr.mxu0 0.0
    %1441 = vmatpush1.msra.mxu0 0.0
    %1442 = vmatprep.subr.mxu0 0.0
    %1443 = vmatpush1.msra.mxu0 0.0
    %1444 = vmatprep.subr.mxu0 0.0
    %1445 = vmatpush1.msra.mxu0 0.0
    %1446 = vmatprep.subr.mxu0 0.0
    %1447 = vmatpush1.msra.mxu0 0.0
    %1448 = vmatprep.subr.mxu0 0.0
    %1449 = vmatpush1.msra.mxu0 0.0
    %1450 = vmatprep.subr.mxu0 0.0
    %1451 = vmatpush1.msra.mxu0 0.0
    %1452 = vmatprep.subr.mxu0 0.0
    %1453 = vmatpush1.msra.mxu0 0.0
    %1454 = vmatprep.subr.mxu0 0.0
    %1455 = vmatpush1.msra.mxu0 0.0
    %1456 = vmatprep.subr.mxu0 0.0
    %1457 = vmatpush1.msra.mxu0 0.0
    %1458 = vmatprep.subr.mxu0 0.0
    %1459 = vmatpush1.msra.mxu0 0.0
    %1460 = vmatprep.subr.mxu0 0.0
    %1461 = vmatpush1.msra.mxu0 0.0
    %1462 = vmatprep.subr.mxu0 0.0
    %1463 = vmatpush1.msra.mxu0 0.0
    %1464 = vmatprep.subr.mxu0 0.0
    %1465 = vmatpush1.msra.mxu0 0.0
    %1466 = vmatprep.subr.mxu0 0.0
    %1467 = vmatpush1.msra.mxu0 0.0
    %1468 = vmatprep.subr.mxu0 0.0
    %1469 = vmatpush1.msra.mxu0 0.0
    %1470 = vmatprep.subr.mxu0 0.0
    %1471 = vmatpush1.msra.mxu0 0.0
    %1472 = vmatprep.subr.mxu0 0.0
    %1473 = vmatpush1.msra.mxu0 0.0
    %1474 = vmatprep.subr.mxu0 0.0
    %1475 = vmatpush1.msra.mxu0 0.0
    %1476 = vmatprep.subr.mxu0 0.0
    %1477 = vmatpush1.msra.mxu0 0.0
    %1478 = vmatprep.subr.mxu0 0.0
    %1479 = vmatpush1.msra.mxu0 0.0
    %1480 = vmatprep.subr.mxu0 0.0
    %1481 = vmatpush1.msra.mxu0 0.0
    %1482 = vmatprep.subr.mxu0 0.0
    %1483 = vmatpush1.msra.mxu0 0.0
    %1484 = vmatprep.subr.mxu0 0.0
    %1485 = vmatpush1.msra.mxu0 0.0
    %1486 = vmatprep.subr.mxu0 0.0
    %1487 = vmatpush1.msra.mxu0 0.0
    %1488 = vmatprep.subr.mxu0 0.0
    %1489 = vmatpush1.msra.mxu0 0.0
    %1490 = vmatprep.subr.mxu0 0.0
    %1491 = vmatpush1.msra.mxu0 0.0
    %1492 = vmatprep.mubr.f32.mxu0 0.0
    %1493 = vmatmul.mubr.f32.gmra.mrb[0].mxu0 %v1417
    %v1494 = vpop.f32.mrb[0].mxu0
    %v1495 = vadd.f32 0.0, %v1494
    %v1496 = vpop.f32.mrb[0].mxu0
    %1497 = vmatprep.mubr.f32.mxu0 0.0
    %1498 = vmatmul.mubr.f32.gmra.mrb[0].mxu0 %v1420
    %v1499 = vpop.f32.mrb[0].mxu0
    %v1500 = vadd.f32 0.0, %v1499
    %v1501 = vpop.f32.mrb[0].mxu0
    %1502 = vmatprep.mubr.f32.mxu0 0.0
    %1503 = vmatmul.mubr.f32.gmra.mrb[0].mxu0 %v1423
    %v1504 = vpop.f32.mrb[0].mxu0
    %v1505 = vadd.f32 0.0, %v1504
    %v1506 = vpop.f32.mrb[0].mxu0
    %1507 = vmatprep.mubr.f32.mxu0 0.0
    %1508 = vmatmul.mubr.f32.gmra.mrb[0].mxu0 %v1426
    %v1509 = vpop.f32.mrb[0].mxu0
    %v1510 = vadd.f32 0.0, %v1509
    %v1511 = vpop.f32.mrb[0].mxu0
    %1512 = vdwg.mxu0
    %v1513 = vadd.f32 %v1412, %v1495
    %v1514 = vadd.f32 %v1413, %v1500
    %v1515 = vadd.f32 %v1414, %v1505
    %v1516 = vadd.f32 %v1415, %v1510
    %v1517 = vld [vmem:[%s5] sm:$0x1]
    %v1519 = vlaneseq
    %v1520 = vshrl.u32 %v1519, 7
    %v1521 = vsub.s32 0, %v1520
    %v1522 = vrot.slane %v1517, %v1521
    %v1524 = vadd.f32 %v1513, %v1522
    %v1525 = vadd.f32 %v1514, %v1522
    %v1526 = vadd.f32 %v1515, %v1522
    %v1527 = vadd.f32 %v1516, %v1522
    %vm1528 = vcmp.ge.f32.partialorder %v1524, 0.0
    %vm1529 = vcmp.ge.f32.partialorder %v1525, 0.0
    %vm1530 = vcmp.ge.f32.partialorder %v1526, 0.0
    %vm1531 = vcmp.ge.f32.partialorder %v1527, 0.0
    %v1532 = vmul.f32 %v1524, 0.01
    %v1533 = vmul.f32 %v1525, 0.01
    %v1534 = vmul.f32 %v1526, 0.01
    %v1535 = vmul.f32 %v1527, 0.01
    %v1536 = vsel %vm1528, %v1524, %v1532
    %v1537 = vsel %vm1529, %v1525, %v1533
    %v1538 = vsel %vm1530, %v1526, %v1534
    %v1539 = vsel %vm1531, %v1527, %v1535
    %v1540 = vld [vmem:[%s6] sm:$0xff]
    %v1541 = vld [vmem:[%s6 + $0x8] sm:$0xff]
    %v1542 = vld [vmem:[%s6 + $0x10] sm:$0xff]
    %v1543 = vld [vmem:[%s6 + $0x18] sm:$0xff]
    %v1544 = vld [vmem:[%s6 + $0x20] sm:$0xff]
    %v1545 = vld [vmem:[%s6 + $0x28] sm:$0xff]
    %v1546 = vld [vmem:[%s6 + $0x30] sm:$0xff]
    %v1547 = vld [vmem:[%s6 + $0x38] sm:$0xff]
    %v1548 = vld [vmem:[%s6 + $0x40] sm:$0xff]
    %v1549 = vld [vmem:[%s6 + $0x48] sm:$0xff]
    %v1550 = vld [vmem:[%s6 + $0x50] sm:$0xff]
    %v1551 = vld [vmem:[%s6 + $0x58] sm:$0xff]
    %v1552 = vld [vmem:[%s6 + $0x60] sm:$0xff]
    %v1553 = vld [vmem:[%s6 + $0x68] sm:$0xff]
    %v1554 = vld [vmem:[%s6 + $0x70] sm:$0xff]
    %v1555 = vld [vmem:[%s6 + $0x78] sm:$0xff]
    %v1556 = vld [vmem:[%s6 + $0x80] sm:$0xff]
    %v1557 = vld [vmem:[%s6 + $0x88] sm:$0xff]
    %v1558 = vld [vmem:[%s6 + $0x90] sm:$0xff]
    %v1559 = vld [vmem:[%s6 + $0x98] sm:$0xff]
    %v1560 = vld [vmem:[%s6 + $0xa0] sm:$0xff]
    %v1561 = vld [vmem:[%s6 + $0xa8] sm:$0xff]
    %v1562 = vld [vmem:[%s6 + $0xb0] sm:$0xff]
    %v1563 = vld [vmem:[%s6 + $0xb8] sm:$0xff]
    %v1564 = vld [vmem:[%s6 + $0xc0] sm:$0xff]
    %v1565 = vld [vmem:[%s6 + $0xc8] sm:$0xff]
    %v1566 = vld [vmem:[%s6 + $0xd0] sm:$0xff]
    %v1567 = vld [vmem:[%s6 + $0xd8] sm:$0xff]
    %v1568 = vld [vmem:[%s6 + $0xe0] sm:$0xff]
    %v1569 = vld [vmem:[%s6 + $0xe8] sm:$0xff]
    %v1570 = vld [vmem:[%s6 + $0xf0] sm:$0xff]
    %v1571 = vld [vmem:[%s6 + $0xf8] sm:$0xff]
    %v1573 = vrot.slane %v1536, 2
    %vm1574 = vcmask 130048
    %v1575 = vsel %vm1574, %v1573, 0
    %1577 = vmatprep.subr.mxu0 0.0
    %1578 = vmatpush1.msra.mxu0 %v1542
    %1579 = vmatprep.subr.mxu0 0.0
    %1580 = vmatpush1.msra.mxu0 %v1543
    %1581 = vmatprep.subr.mxu0 0.0
    %1582 = vmatpush1.msra.mxu0 0.0
    %1583 = vmatprep.subr.mxu0 0.0
    %1584 = vmatpush1.msra.mxu0 0.0
    %1585 = vmatprep.subr.mxu0 0.0
    %1586 = vmatpush1.msra.mxu0 0.0
    %1587 = vmatprep.subr.mxu0 0.0
    %1588 = vmatpush1.msra.mxu0 0.0
    %1589 = vmatprep.subr.mxu0 0.0
    %1590 = vmatpush1.msra.mxu0 0.0
    %1591 = vmatprep.subr.mxu0 0.0
    %1592 = vmatpush1.msra.mxu0 0.0
    %1593 = vmatprep.subr.mxu0 0.0
    %1594 = vmatpush1.msra.mxu0 0.0
    %1595 = vmatprep.subr.mxu0 0.0
    %1596 = vmatpush1.msra.mxu0 0.0
    %1597 = vmatprep.subr.mxu0 0.0
    %1598 = vmatpush1.msra.mxu0 0.0
    %1599 = vmatprep.subr.mxu0 0.0
    %1600 = vmatpush1.msra.mxu0 0.0
    %1601 = vmatprep.subr.mxu0 0.0
    %1602 = vmatpush1.msra.mxu0 0.0
    %1603 = vmatprep.subr.mxu0 0.0
    %1604 = vmatpush1.msra.mxu0 0.0
    %1605 = vmatprep.subr.mxu0 0.0
    %1606 = vmatpush1.msra.mxu0 0.0
    %1607 = vmatprep.subr.mxu0 0.0
    %1608 = vmatpush1.msra.mxu0 0.0
    %1609 = vmatprep.subr.mxu0 0.0
    %1610 = vmatpush1.msra.mxu0 0.0
    %1611 = vmatprep.subr.mxu0 0.0
    %1612 = vmatpush1.msra.mxu0 0.0
    %1613 = vmatprep.subr.mxu0 0.0
    %1614 = vmatpush1.msra.mxu0 0.0
    %1615 = vmatprep.subr.mxu0 0.0
    %1616 = vmatpush1.msra.mxu0 0.0
    %1617 = vmatprep.subr.mxu0 0.0
    %1618 = vmatpush1.msra.mxu0 0.0
    %1619 = vmatprep.subr.mxu0 0.0
    %1620 = vmatpush1.msra.mxu0 0.0
    %1621 = vmatprep.subr.mxu0 0.0
    %1622 = vmatpush1.msra.mxu0 0.0
    %1623 = vmatprep.subr.mxu0 0.0
    %1624 = vmatpush1.msra.mxu0 0.0
    %1625 = vmatprep.subr.mxu0 0.0
    %1626 = vmatpush1.msra.mxu0 0.0
    %1627 = vmatprep.subr.mxu0 0.0
    %1628 = vmatpush1.msra.mxu0 0.0
    %1629 = vmatprep.subr.mxu0 0.0
    %1630 = vmatpush1.msra.mxu0 0.0
    %1631 = vmatprep.subr.mxu0 0.0
    %1632 = vmatpush1.msra.mxu0 0.0
    %1633 = vmatprep.subr.mxu0 0.0
    %1634 = vmatpush1.msra.mxu0 0.0
    %1635 = vmatprep.subr.mxu0 0.0
    %1636 = vmatpush1.msra.mxu0 0.0
    %1637 = vmatprep.subr.mxu0 0.0
    %1638 = vmatpush1.msra.mxu0 0.0
    %1639 = vmatprep.subr.mxu0 0.0
    %1640 = vmatpush1.msra.mxu0 0.0
    %1641 = vmatprep.mubr.f32.mxu0 0.0
    %1642 = vmatmul.mubr.f32.gmra.mrb[0].mxu0 %v1575
    %v1643 = vpop.f32.mrb[0].mxu0
    %v1644 = vadd.f32 0.0, %v1643
    %v1645 = vpop.f32.mrb[0].mxu0
    %1646 = vdwg.mxu0
    %v1647 = vsel %vm1574, %v1536, 0
    %1649 = vmatprep.subr.mxu0 0.0
    %1650 = vmatpush1.msra.mxu0 %v1540
    %1651 = vmatprep.subr.mxu0 0.0
    %1652 = vmatpush1.msra.mxu0 %v1541
    %1653 = vmatprep.subr.mxu0 0.0
    %1654 = vmatpush1.msra.mxu0 0.0
    %1655 = vmatprep.subr.mxu0 0.0
    %1656 = vmatpush1.msra.mxu0 0.0
    %1657 = vmatprep.subr.mxu0 0.0
    %1658 = vmatpush1.msra.mxu0 0.0
    %1659 = vmatprep.subr.mxu0 0.0
    %1660 = vmatpush1.msra.mxu0 0.0
    %1661 = vmatprep.subr.mxu0 0.0
    %1662 = vmatpush1.msra.mxu0 0.0
    %1663 = vmatprep.subr.mxu0 0.0
    %1664 = vmatpush1.msra.mxu0 0.0
    %1665 = vmatprep.subr.mxu0 0.0
    %1666 = vmatpush1.msra.mxu0 0.0
    %1667 = vmatprep.subr.mxu0 0.0
    %1668 = vmatpush1.msra.mxu0 0.0
    %1669 = vmatprep.subr.mxu0 0.0
    %1670 = vmatpush1.msra.mxu0 0.0
    %1671 = vmatprep.subr.mxu0 0.0
    %1672 = vmatpush1.msra.mxu0 0.0
    %1673 = vmatprep.subr.mxu0 0.0
    %1674 = vmatpush1.msra.mxu0 0.0
    %1675 = vmatprep.subr.mxu0 0.0
    %1676 = vmatpush1.msra.mxu0 0.0
    %1677 = vmatprep.subr.mxu0 0.0
    %1678 = vmatpush1.msra.mxu0 0.0
    %1679 = vmatprep.subr.mxu0 0.0
    %1680 = vmatpush1.msra.mxu0 0.0
    %1681 = vmatprep.subr.mxu0 0.0
    %1682 = vmatpush1.msra.mxu0 0.0
    %1683 = vmatprep.subr.mxu0 0.0
    %1684 = vmatpush1.msra.mxu0 0.0
    %1685 = vmatprep.subr.mxu0 0.0
    %1686 = vmatpush1.msra.mxu0 0.0
    %1687 = vmatprep.subr.mxu0 0.0
    %1688 = vmatpush1.msra.mxu0 0.0
    %1689 = vmatprep.subr.mxu0 0.0
    %1690 = vmatpush1.msra.mxu0 0.0
    %1691 = vmatprep.subr.mxu0 0.0
    %1692 = vmatpush1.msra.mxu0 0.0
    %1693 = vmatprep.subr.mxu0 0.0
    %1694 = vmatpush1.msra.mxu0 0.0
    %1695 = vmatprep.subr.mxu0 0.0
    %1696 = vmatpush1.msra.mxu0 0.0
    %1697 = vmatprep.subr.mxu0 0.0
    %1698 = vmatpush1.msra.mxu0 0.0
    %1699 = vmatprep.subr.mxu0 0.0
    %1700 = vmatpush1.msra.mxu0 0.0
    %1701 = vmatprep.subr.mxu0 0.0
    %1702 = vmatpush1.msra.mxu0 0.0
    %1703 = vmatprep.subr.mxu0 0.0
    %1704 = vmatpush1.msra.mxu0 0.0
    %1705 = vmatprep.subr.mxu0 0.0
    %1706 = vmatpush1.msra.mxu0 0.0
    %1707 = vmatprep.subr.mxu0 0.0
    %1708 = vmatpush1.msra.mxu0 0.0
    %1709 = vmatprep.subr.mxu0 0.0
    %1710 = vmatpush1.msra.mxu0 0.0
    %1711 = vmatprep.subr.mxu0 0.0
    %1712 = vmatpush1.msra.mxu0 0.0
    %1713 = vmatprep.mubr.f32.mxu0 0.0
    %1714 = vmatmul.mubr.f32.gmra.mrb[0].mxu0 %v1647
    %v1715 = vpop.f32.mrb[0].mxu0
    %v1716 = vadd.f32 %v1644, %v1715
    %v1717 = vpop.f32.mrb[0].mxu0
    %1718 = vdwg.mxu0
    %v1719 = vrot.slane %v1536, 4
    %v1720 = vsel %vm1574, %v1719, 0
    %1722 = vmatprep.subr.mxu0 0.0
    %1723 = vmatpush1.msra.mxu0 %v1544
    %1724 = vmatprep.subr.mxu0 0.0
    %1725 = vmatpush1.msra.mxu0 %v1545
    %1726 = vmatprep.subr.mxu0 0.0
    %1727 = vmatpush1.msra.mxu0 0.0
    %1728 = vmatprep.subr.mxu0 0.0
    %1729 = vmatpush1.msra.mxu0 0.0
    %1730 = vmatprep.subr.mxu0 0.0
    %1731 = vmatpush1.msra.mxu0 0.0
    %1732 = vmatprep.subr.mxu0 0.0
    %1733 = vmatpush1.msra.mxu0 0.0
    %1734 = vmatprep.subr.mxu0 0.0
    %1735 = vmatpush1.msra.mxu0 0.0
    %1736 = vmatprep.subr.mxu0 0.0
    %1737 = vmatpush1.msra.mxu0 0.0
    %1738 = vmatprep.subr.mxu0 0.0
    %1739 = vmatpush1.msra.mxu0 0.0
    %1740 = vmatprep.subr.mxu0 0.0
    %1741 = vmatpush1.msra.mxu0 0.0
    %1742 = vmatprep.subr.mxu0 0.0
    %1743 = vmatpush1.msra.mxu0 0.0
    %1744 = vmatprep.subr.mxu0 0.0
    %1745 = vmatpush1.msra.mxu0 0.0
    %1746 = vmatprep.subr.mxu0 0.0
    %1747 = vmatpush1.msra.mxu0 0.0
    %1748 = vmatprep.subr.mxu0 0.0
    %1749 = vmatpush1.msra.mxu0 0.0
    %1750 = vmatprep.subr.mxu0 0.0
    %1751 = vmatpush1.msra.mxu0 0.0
    %1752 = vmatprep.subr.mxu0 0.0
    %1753 = vmatpush1.msra.mxu0 0.0
    %1754 = vmatprep.subr.mxu0 0.0
    %1755 = vmatpush1.msra.mxu0 0.0
    %1756 = vmatprep.subr.mxu0 0.0
    %1757 = vmatpush1.msra.mxu0 0.0
    %1758 = vmatprep.subr.mxu0 0.0
    %1759 = vmatpush1.msra.mxu0 0.0
    %1760 = vmatprep.subr.mxu0 0.0
    %1761 = vmatpush1.msra.mxu0 0.0
    %1762 = vmatprep.subr.mxu0 0.0
    %1763 = vmatpush1.msra.mxu0 0.0
    %1764 = vmatprep.subr.mxu0 0.0
    %1765 = vmatpush1.msra.mxu0 0.0
    %1766 = vmatprep.subr.mxu0 0.0
    %1767 = vmatpush1.msra.mxu0 0.0
    %1768 = vmatprep.subr.mxu0 0.0
    %1769 = vmatpush1.msra.mxu0 0.0
    %1770 = vmatprep.subr.mxu0 0.0
    %1771 = vmatpush1.msra.mxu0 0.0
    %1772 = vmatprep.subr.mxu0 0.0
    %1773 = vmatpush1.msra.mxu0 0.0
    %1774 = vmatprep.subr.mxu0 0.0
    %1775 = vmatpush1.msra.mxu0 0.0
    %1776 = vmatprep.subr.mxu0 0.0
    %1777 = vmatpush1.msra.mxu0 0.0
    %1778 = vmatprep.subr.mxu0 0.0
    %1779 = vmatpush1.msra.mxu0 0.0
    %1780 = vmatprep.subr.mxu0 0.0
    %1781 = vmatpush1.msra.mxu0 0.0
    %1782 = vmatprep.subr.mxu0 0.0
    %1783 = vmatpush1.msra.mxu0 0.0
    %1784 = vmatprep.subr.mxu0 0.0
    %1785 = vmatpush1.msra.mxu0 0.0
    %1786 = vmatprep.mubr.f32.mxu0 0.0
    %1787 = vmatmul.mubr.f32.gmra.mrb[0].mxu0 %v1720
    %v1788 = vpop.f32.mrb[0].mxu0
    %v1789 = vadd.f32 0.0, %v1788
    %v1790 = vpop.f32.mrb[0].mxu0
    %1791 = vdwg.mxu0
    %v1792 = vadd.f32 %v1716, %v1789
    %v1793 = vrot.slane %v1536, 6
    %v1794 = vsel %vm1574, %v1793, 0
    %1796 = vmatprep.subr.mxu0 0.0
    %1797 = vmatpush1.msra.mxu0 %v1546
    %1798 = vmatprep.subr.mxu0 0.0
    %1799 = vmatpush1.msra.mxu0 %v1547
    %1800 = vmatprep.subr.mxu0 0.0
    %1801 = vmatpush1.msra.mxu0 0.0
    %1802 = vmatprep.subr.mxu0 0.0
    %1803 = vmatpush1.msra.mxu0 0.0
    %1804 = vmatprep.subr.mxu0 0.0
    %1805 = vmatpush1.msra.mxu0 0.0
    %1806 = vmatprep.subr.mxu0 0.0
    %1807 = vmatpush1.msra.mxu0 0.0
    %1808 = vmatprep.subr.mxu0 0.0
    %1809 = vmatpush1.msra.mxu0 0.0
    %1810 = vmatprep.subr.mxu0 0.0
    %1811 = vmatpush1.msra.mxu0 0.0
    %1812 = vmatprep.subr.mxu0 0.0
    %1813 = vmatpush1.msra.mxu0 0.0
    %1814 = vmatprep.subr.mxu0 0.0
    %1815 = vmatpush1.msra.mxu0 0.0
    %1816 = vmatprep.subr.mxu0 0.0
    %1817 = vmatpush1.msra.mxu0 0.0
    %1818 = vmatprep.subr.mxu0 0.0
    %1819 = vmatpush1.msra.mxu0 0.0
    %1820 = vmatprep.subr.mxu0 0.0
    %1821 = vmatpush1.msra.mxu0 0.0
    %1822 = vmatprep.subr.mxu0 0.0
    %1823 = vmatpush1.msra.mxu0 0.0
    %1824 = vmatprep.subr.mxu0 0.0
    %1825 = vmatpush1.msra.mxu0 0.0
    %1826 = vmatprep.subr.mxu0 0.0
    %1827 = vmatpush1.msra.mxu0 0.0
    %1828 = vmatprep.subr.mxu0 0.0
    %1829 = vmatpush1.msra.mxu0 0.0
    %1830 = vmatprep.subr.mxu0 0.0
    %1831 = vmatpush1.msra.mxu0 0.0
    %1832 = vmatprep.subr.mxu0 0.0
    %1833 = vmatpush1.msra.mxu0 0.0
    %1834 = vmatprep.subr.mxu0 0.0
    %1835 = vmatpush1.msra.mxu0 0.0
    %1836 = vmatprep.subr.mxu0 0.0
    %1837 = vmatpush1.msra.mxu0 0.0
    %1838 = vmatprep.subr.mxu0 0.0
    %1839 = vmatpush1.msra.mxu0 0.0
    %1840 = vmatprep.subr.mxu0 0.0
    %1841 = vmatpush1.msra.mxu0 0.0
    %1842 = vmatprep.subr.mxu0 0.0
    %1843 = vmatpush1.msra.mxu0 0.0
    %1844 = vmatprep.subr.mxu0 0.0
    %1845 = vmatpush1.msra.mxu0 0.0
    %1846 = vmatprep.subr.mxu0 0.0
    %1847 = vmatpush1.msra.mxu0 0.0
    %1848 = vmatprep.subr.mxu0 0.0
    %1849 = vmatpush1.msra.mxu0 0.0
    %1850 = vmatprep.subr.mxu0 0.0
    %1851 = vmatpush1.msra.mxu0 0.0
    %1852 = vmatprep.subr.mxu0 0.0
    %1853 = vmatpush1.msra.mxu0 0.0
    %1854 = vmatprep.subr.mxu0 0.0
    %1855 = vmatpush1.msra.mxu0 0.0
    %1856 = vmatprep.subr.mxu0 0.0
    %1857 = vmatpush1.msra.mxu0 0.0
    %1858 = vmatprep.subr.mxu0 0.0
    %1859 = vmatpush1.msra.mxu0 0.0
    %1860 = vmatprep.mubr.f32.mxu0 0.0
    %1861 = vmatmul.mubr.f32.gmra.mrb[0].mxu0 %v1794
    %v1862 = vpop.f32.mrb[0].mxu0
    %v1863 = vadd.f32 0.0, %v1862
    %v1864 = vpop.f32.mrb[0].mxu0
    %1865 = vdwg.mxu0
    %v1866 = vadd.f32 %v1792, %v1863
    %v1868 = vsel %vm1574, %v1537, 0
    %1870 = vmatprep.subr.mxu0 0.0
    %1871 = vmatpush1.msra.mxu0 %v1548
    %1872 = vmatprep.subr.mxu0 0.0
    %1873 = vmatpush1.msra.mxu0 %v1549
    %1874 = vmatprep.subr.mxu0 0.0
    %1875 = vmatpush1.msra.mxu0 0.0
    %1876 = vmatprep.subr.mxu0 0.0
    %1877 = vmatpush1.msra.mxu0 0.0
    %1878 = vmatprep.subr.mxu0 0.0
    %1879 = vmatpush1.msra.mxu0 0.0
    %1880 = vmatprep.subr.mxu0 0.0
    %1881 = vmatpush1.msra.mxu0 0.0
    %1882 = vmatprep.subr.mxu0 0.0
    %1883 = vmatpush1.msra.mxu0 0.0
    %1884 = vmatprep.subr.mxu0 0.0
    %1885 = vmatpush1.msra.mxu0 0.0
    %1886 = vmatprep.subr.mxu0 0.0
    %1887 = vmatpush1.msra.mxu0 0.0
    %1888 = vmatprep.subr.mxu0 0.0
    %1889 = vmatpush1.msra.mxu0 0.0
    %1890 = vmatprep.subr.mxu0 0.0
    %1891 = vmatpush1.msra.mxu0 0.0
    %1892 = vmatprep.subr.mxu0 0.0
    %1893 = vmatpush1.msra.mxu0 0.0
    %1894 = vmatprep.subr.mxu0 0.0
    %1895 = vmatpush1.msra.mxu0 0.0
    %1896 = vmatprep.subr.mxu0 0.0
    %1897 = vmatpush1.msra.mxu0 0.0
    %1898 = vmatprep.subr.mxu0 0.0
    %1899 = vmatpush1.msra.mxu0 0.0
    %1900 = vmatprep.subr.mxu0 0.0
    %1901 = vmatpush1.msra.mxu0 0.0
    %1902 = vmatprep.subr.mxu0 0.0
    %1903 = vmatpush1.msra.mxu0 0.0
    %1904 = vmatprep.subr.mxu0 0.0
    %1905 = vmatpush1.msra.mxu0 0.0
    %1906 = vmatprep.subr.mxu0 0.0
    %1907 = vmatpush1.msra.mxu0 0.0
    %1908 = vmatprep.subr.mxu0 0.0
    %1909 = vmatpush1.msra.mxu0 0.0
    %1910 = vmatprep.subr.mxu0 0.0
    %1911 = vmatpush1.msra.mxu0 0.0
    %1912 = vmatprep.subr.mxu0 0.0
    %1913 = vmatpush1.msra.mxu0 0.0
    %1914 = vmatprep.subr.mxu0 0.0
    %1915 = vmatpush1.msra.mxu0 0.0
    %1916 = vmatprep.subr.mxu0 0.0
    %1917 = vmatpush1.msra.mxu0 0.0
    %1918 = vmatprep.subr.mxu0 0.0
    %1919 = vmatpush1.msra.mxu0 0.0
    %1920 = vmatprep.subr.mxu0 0.0
    %1921 = vmatpush1.msra.mxu0 0.0
    %1922 = vmatprep.subr.mxu0 0.0
    %1923 = vmatpush1.msra.mxu0 0.0
    %1924 = vmatprep.subr.mxu0 0.0
    %1925 = vmatpush1.msra.mxu0 0.0
    %1926 = vmatprep.subr.mxu0 0.0
    %1927 = vmatpush1.msra.mxu0 0.0
    %1928 = vmatprep.subr.mxu0 0.0
    %1929 = vmatpush1.msra.mxu0 0.0
    %1930 = vmatprep.subr.mxu0 0.0
    %1931 = vmatpush1.msra.mxu0 0.0
    %1932 = vmatprep.subr.mxu0 0.0
    %1933 = vmatpush1.msra.mxu0 0.0
    %1934 = vmatprep.mubr.f32.mxu0 0.0
    %1935 = vmatmul.mubr.f32.gmra.mrb[0].mxu0 %v1868
    %v1936 = vpop.f32.mrb[0].mxu0
    %v1937 = vadd.f32 0.0, %v1936
    %v1938 = vpop.f32.mrb[0].mxu0
    %1939 = vdwg.mxu0
    %v1940 = vadd.f32 %v1866, %v1937
    %v1941 = vrot.slane %v1537, 2
    %v1942 = vsel %vm1574, %v1941, 0
    %1944 = vmatprep.subr.mxu0 0.0
    %1945 = vmatpush1.msra.mxu0 %v1550
    %1946 = vmatprep.subr.mxu0 0.0
    %1947 = vmatpush1.msra.mxu0 %v1551
    %1948 = vmatprep.subr.mxu0 0.0
    %1949 = vmatpush1.msra.mxu0 0.0
    %1950 = vmatprep.subr.mxu0 0.0
    %1951 = vmatpush1.msra.mxu0 0.0
    %1952 = vmatprep.subr.mxu0 0.0
    %1953 = vmatpush1.msra.mxu0 0.0
    %1954 = vmatprep.subr.mxu0 0.0
    %1955 = vmatpush1.msra.mxu0 0.0
    %1956 = vmatprep.subr.mxu0 0.0
    %1957 = vmatpush1.msra.mxu0 0.0
    %1958 = vmatprep.subr.mxu0 0.0
    %1959 = vmatpush1.msra.mxu0 0.0
    %1960 = vmatprep.subr.mxu0 0.0
    %1961 = vmatpush1.msra.mxu0 0.0
    %1962 = vmatprep.subr.mxu0 0.0
    %1963 = vmatpush1.msra.mxu0 0.0
    %1964 = vmatprep.subr.mxu0 0.0
    %1965 = vmatpush1.msra.mxu0 0.0
    %1966 = vmatprep.subr.mxu0 0.0
    %1967 = vmatpush1.msra.mxu0 0.0
    %1968 = vmatprep.subr.mxu0 0.0
    %1969 = vmatpush1.msra.mxu0 0.0
    %1970 = vmatprep.subr.mxu0 0.0
    %1971 = vmatpush1.msra.mxu0 0.0
    %1972 = vmatprep.subr.mxu0 0.0
    %1973 = vmatpush1.msra.mxu0 0.0
    %1974 = vmatprep.subr.mxu0 0.0
    %1975 = vmatpush1.msra.mxu0 0.0
    %1976 = vmatprep.subr.mxu0 0.0
    %1977 = vmatpush1.msra.mxu0 0.0
    %1978 = vmatprep.subr.mxu0 0.0
    %1979 = vmatpush1.msra.mxu0 0.0
    %1980 = vmatprep.subr.mxu0 0.0
    %1981 = vmatpush1.msra.mxu0 0.0
    %1982 = vmatprep.subr.mxu0 0.0
    %1983 = vmatpush1.msra.mxu0 0.0
    %1984 = vmatprep.subr.mxu0 0.0
    %1985 = vmatpush1.msra.mxu0 0.0
    %1986 = vmatprep.subr.mxu0 0.0
    %1987 = vmatpush1.msra.mxu0 0.0
    %1988 = vmatprep.subr.mxu0 0.0
    %1989 = vmatpush1.msra.mxu0 0.0
    %1990 = vmatprep.subr.mxu0 0.0
    %1991 = vmatpush1.msra.mxu0 0.0
    %1992 = vmatprep.subr.mxu0 0.0
    %1993 = vmatpush1.msra.mxu0 0.0
    %1994 = vmatprep.subr.mxu0 0.0
    %1995 = vmatpush1.msra.mxu0 0.0
    %1996 = vmatprep.subr.mxu0 0.0
    %1997 = vmatpush1.msra.mxu0 0.0
    %1998 = vmatprep.subr.mxu0 0.0
    %1999 = vmatpush1.msra.mxu0 0.0
    %2000 = vmatprep.subr.mxu0 0.0
    %2001 = vmatpush1.msra.mxu0 0.0
    %2002 = vmatprep.subr.mxu0 0.0
    %2003 = vmatpush1.msra.mxu0 0.0
    %2004 = vmatprep.subr.mxu0 0.0
    %2005 = vmatpush1.msra.mxu0 0.0
    %2006 = vmatprep.subr.mxu0 0.0
    %2007 = vmatpush1.msra.mxu0 0.0
    %2008 = vmatprep.mubr.f32.mxu0 0.0
    %2009 = vmatmul.mubr.f32.gmra.mrb[0].mxu0 %v1942
    %v2010 = vpop.f32.mrb[0].mxu0
    %v2011 = vadd.f32 0.0, %v2010
    %v2012 = vpop.f32.mrb[0].mxu0
    %2013 = vdwg.mxu0
    %v2014 = vadd.f32 %v1940, %v2011
    %v2015 = vrot.slane %v1537, 4
    %v2016 = vsel %vm1574, %v2015, 0
    %2018 = vmatprep.subr.mxu0 0.0
    %2019 = vmatpush1.msra.mxu0 %v1552
    %2020 = vmatprep.subr.mxu0 0.0
    %2021 = vmatpush1.msra.mxu0 %v1553
    %2022 = vmatprep.subr.mxu0 0.0
    %2023 = vmatpush1.msra.mxu0 0.0
    %2024 = vmatprep.subr.mxu0 0.0
    %2025 = vmatpush1.msra.mxu0 0.0
    %2026 = vmatprep.subr.mxu0 0.0
    %2027 = vmatpush1.msra.mxu0 0.0
    %2028 = vmatprep.subr.mxu0 0.0
    %2029 = vmatpush1.msra.mxu0 0.0
    %2030 = vmatprep.subr.mxu0 0.0
    %2031 = vmatpush1.msra.mxu0 0.0
    %2032 = vmatprep.subr.mxu0 0.0
    %2033 = vmatpush1.msra.mxu0 0.0
    %2034 = vmatprep.subr.mxu0 0.0
    %2035 = vmatpush1.msra.mxu0 0.0
    %2036 = vmatprep.subr.mxu0 0.0
    %2037 = vmatpush1.msra.mxu0 0.0
    %2038 = vmatprep.subr.mxu0 0.0
    %2039 = vmatpush1.msra.mxu0 0.0
    %2040 = vmatprep.subr.mxu0 0.0
    %2041 = vmatpush1.msra.mxu0 0.0
    %2042 = vmatprep.subr.mxu0 0.0
    %2043 = vmatpush1.msra.mxu0 0.0
    %2044 = vmatprep.subr.mxu0 0.0
    %2045 = vmatpush1.msra.mxu0 0.0
    %2046 = vmatprep.subr.mxu0 0.0
    %2047 = vmatpush1.msra.mxu0 0.0
    %2048 = vmatprep.subr.mxu0 0.0
    %2049 = vmatpush1.msra.mxu0 0.0
    %2050 = vmatprep.subr.mxu0 0.0
    %2051 = vmatpush1.msra.mxu0 0.0
    %2052 = vmatprep.subr.mxu0 0.0
    %2053 = vmatpush1.msra.mxu0 0.0
    %2054 = vmatprep.subr.mxu0 0.0
    %2055 = vmatpush1.msra.mxu0 0.0
    %2056 = vmatprep.subr.mxu0 0.0
    %2057 = vmatpush1.msra.mxu0 0.0
    %2058 = vmatprep.subr.mxu0 0.0
    %2059 = vmatpush1.msra.mxu0 0.0
    %2060 = vmatprep.subr.mxu0 0.0
    %2061 = vmatpush1.msra.mxu0 0.0
    %2062 = vmatprep.subr.mxu0 0.0
    %2063 = vmatpush1.msra.mxu0 0.0
    %2064 = vmatprep.subr.mxu0 0.0
    %2065 = vmatpush1.msra.mxu0 0.0
    %2066 = vmatprep.subr.mxu0 0.0
    %2067 = vmatpush1.msra.mxu0 0.0
    %2068 = vmatprep.subr.mxu0 0.0
    %2069 = vmatpush1.msra.mxu0 0.0
    %2070 = vmatprep.subr.mxu0 0.0
    %2071 = vmatpush1.msra.mxu0 0.0
    %2072 = vmatprep.subr.mxu0 0.0
    %2073 = vmatpush1.msra.mxu0 0.0
    %2074 = vmatprep.subr.mxu0 0.0
    %2075 = vmatpush1.msra.mxu0 0.0
    %2076 = vmatprep.subr.mxu0 0.0
    %2077 = vmatpush1.msra.mxu0 0.0
    %2078 = vmatprep.subr.mxu0 0.0
    %2079 = vmatpush1.msra.mxu0 0.0
    %2080 = vmatprep.subr.mxu0 0.0
    %2081 = vmatpush1.msra.mxu0 0.0
    %2082 = vmatprep.mubr.f32.mxu0 0.0
    %2083 = vmatmul.mubr.f32.gmra.mrb[0].mxu0 %v2016
    %v2084 = vpop.f32.mrb[0].mxu0
    %v2085 = vadd.f32 0.0, %v2084
    %v2086 = vpop.f32.mrb[0].mxu0
    %2087 = vdwg.mxu0
    %v2088 = vadd.f32 %v2014, %v2085
    %v2089 = vrot.slane %v1537, 6
    %v2090 = vsel %vm1574, %v2089, 0
    %2092 = vmatprep.subr.mxu0 0.0
    %2093 = vmatpush1.msra.mxu0 %v1554
    %2094 = vmatprep.subr.mxu0 0.0
    %2095 = vmatpush1.msra.mxu0 %v1555
    %2096 = vmatprep.subr.mxu0 0.0
    %2097 = vmatpush1.msra.mxu0 0.0
    %2098 = vmatprep.subr.mxu0 0.0
    %2099 = vmatpush1.msra.mxu0 0.0
    %2100 = vmatprep.subr.mxu0 0.0
    %2101 = vmatpush1.msra.mxu0 0.0
    %2102 = vmatprep.subr.mxu0 0.0
    %2103 = vmatpush1.msra.mxu0 0.0
    %2104 = vmatprep.subr.mxu0 0.0
    %2105 = vmatpush1.msra.mxu0 0.0
    %2106 = vmatprep.subr.mxu0 0.0
    %2107 = vmatpush1.msra.mxu0 0.0
    %2108 = vmatprep.subr.mxu0 0.0
    %2109 = vmatpush1.msra.mxu0 0.0
    %2110 = vmatprep.subr.mxu0 0.0
    %2111 = vmatpush1.msra.mxu0 0.0
    %2112 = vmatprep.subr.mxu0 0.0
    %2113 = vmatpush1.msra.mxu0 0.0
    %2114 = vmatprep.subr.mxu0 0.0
    %2115 = vmatpush1.msra.mxu0 0.0
    %2116 = vmatprep.subr.mxu0 0.0
    %2117 = vmatpush1.msra.mxu0 0.0
    %2118 = vmatprep.subr.mxu0 0.0
    %2119 = vmatpush1.msra.mxu0 0.0
    %2120 = vmatprep.subr.mxu0 0.0
    %2121 = vmatpush1.msra.mxu0 0.0
    %2122 = vmatprep.subr.mxu0 0.0
    %2123 = vmatpush1.msra.mxu0 0.0
    %2124 = vmatprep.subr.mxu0 0.0
    %2125 = vmatpush1.msra.mxu0 0.0
    %2126 = vmatprep.subr.mxu0 0.0
    %2127 = vmatpush1.msra.mxu0 0.0
    %2128 = vmatprep.subr.mxu0 0.0
    %2129 = vmatpush1.msra.mxu0 0.0
    %2130 = vmatprep.subr.mxu0 0.0
    %2131 = vmatpush1.msra.mxu0 0.0
    %2132 = vmatprep.subr.mxu0 0.0
    %2133 = vmatpush1.msra.mxu0 0.0
    %2134 = vmatprep.subr.mxu0 0.0
    %2135 = vmatpush1.msra.mxu0 0.0
    %2136 = vmatprep.subr.mxu0 0.0
    %2137 = vmatpush1.msra.mxu0 0.0
    %2138 = vmatprep.subr.mxu0 0.0
    %2139 = vmatpush1.msra.mxu0 0.0
    %2140 = vmatprep.subr.mxu0 0.0
    %2141 = vmatpush1.msra.mxu0 0.0
    %2142 = vmatprep.subr.mxu0 0.0
    %2143 = vmatpush1.msra.mxu0 0.0
    %2144 = vmatprep.subr.mxu0 0.0
    %2145 = vmatpush1.msra.mxu0 0.0
    %2146 = vmatprep.subr.mxu0 0.0
    %2147 = vmatpush1.msra.mxu0 0.0
    %2148 = vmatprep.subr.mxu0 0.0
    %2149 = vmatpush1.msra.mxu0 0.0
    %2150 = vmatprep.subr.mxu0 0.0
    %2151 = vmatpush1.msra.mxu0 0.0
    %2152 = vmatprep.subr.mxu0 0.0
    %2153 = vmatpush1.msra.mxu0 0.0
    %2154 = vmatprep.subr.mxu0 0.0
    %2155 = vmatpush1.msra.mxu0 0.0
    %2156 = vmatprep.mubr.f32.mxu0 0.0
    %2157 = vmatmul.mubr.f32.gmra.mrb[0].mxu0 %v2090
    %v2158 = vpop.f32.mrb[0].mxu0
    %v2159 = vadd.f32 0.0, %v2158
    %v2160 = vpop.f32.mrb[0].mxu0
    %2161 = vdwg.mxu0
    %v2162 = vadd.f32 %v2088, %v2159
    %v2164 = vsel %vm1574, %v1538, 0
    %2166 = vmatprep.subr.mxu0 0.0
    %2167 = vmatpush1.msra.mxu0 %v1556
    %2168 = vmatprep.subr.mxu0 0.0
    %2169 = vmatpush1.msra.mxu0 %v1557
    %2170 = vmatprep.subr.mxu0 0.0
    %2171 = vmatpush1.msra.mxu0 0.0
    %2172 = vmatprep.subr.mxu0 0.0
    %2173 = vmatpush1.msra.mxu0 0.0
    %2174 = vmatprep.subr.mxu0 0.0
    %2175 = vmatpush1.msra.mxu0 0.0
    %2176 = vmatprep.subr.mxu0 0.0
    %2177 = vmatpush1.msra.mxu0 0.0
    %2178 = vmatprep.subr.mxu0 0.0
    %2179 = vmatpush1.msra.mxu0 0.0
    %2180 = vmatprep.subr.mxu0 0.0
    %2181 = vmatpush1.msra.mxu0 0.0
    %2182 = vmatprep.subr.mxu0 0.0
    %2183 = vmatpush1.msra.mxu0 0.0
    %2184 = vmatprep.subr.mxu0 0.0
    %2185 = vmatpush1.msra.mxu0 0.0
    %2186 = vmatprep.subr.mxu0 0.0
    %2187 = vmatpush1.msra.mxu0 0.0
    %2188 = vmatprep.subr.mxu0 0.0
    %2189 = vmatpush1.msra.mxu0 0.0
    %2190 = vmatprep.subr.mxu0 0.0
    %2191 = vmatpush1.msra.mxu0 0.0
    %2192 = vmatprep.subr.mxu0 0.0
    %2193 = vmatpush1.msra.mxu0 0.0
    %2194 = vmatprep.subr.mxu0 0.0
    %2195 = vmatpush1.msra.mxu0 0.0
    %2196 = vmatprep.subr.mxu0 0.0
    %2197 = vmatpush1.msra.mxu0 0.0
    %2198 = vmatprep.subr.mxu0 0.0
    %2199 = vmatpush1.msra.mxu0 0.0
    %2200 = vmatprep.subr.mxu0 0.0
    %2201 = vmatpush1.msra.mxu0 0.0
    %2202 = vmatprep.subr.mxu0 0.0
    %2203 = vmatpush1.msra.mxu0 0.0
    %2204 = vmatprep.subr.mxu0 0.0
    %2205 = vmatpush1.msra.mxu0 0.0
    %2206 = vmatprep.subr.mxu0 0.0
    %2207 = vmatpush1.msra.mxu0 0.0
    %2208 = vmatprep.subr.mxu0 0.0
    %2209 = vmatpush1.msra.mxu0 0.0
    %2210 = vmatprep.subr.mxu0 0.0
    %2211 = vmatpush1.msra.mxu0 0.0
    %2212 = vmatprep.subr.mxu0 0.0
    %2213 = vmatpush1.msra.mxu0 0.0
    %2214 = vmatprep.subr.mxu0 0.0
    %2215 = vmatpush1.msra.mxu0 0.0
    %2216 = vmatprep.subr.mxu0 0.0
    %2217 = vmatpush1.msra.mxu0 0.0
    %2218 = vmatprep.subr.mxu0 0.0
    %2219 = vmatpush1.msra.mxu0 0.0
    %2220 = vmatprep.subr.mxu0 0.0
    %2221 = vmatpush1.msra.mxu0 0.0
    %2222 = vmatprep.subr.mxu0 0.0
    %2223 = vmatpush1.msra.mxu0 0.0
    %2224 = vmatprep.subr.mxu0 0.0
    %2225 = vmatpush1.msra.mxu0 0.0
    %2226 = vmatprep.subr.mxu0 0.0
    %2227 = vmatpush1.msra.mxu0 0.0
    %2228 = vmatprep.subr.mxu0 0.0
    %2229 = vmatpush1.msra.mxu0 0.0
    %2230 = vmatprep.mubr.f32.mxu0 0.0
    %2231 = vmatmul.mubr.f32.gmra.mrb[0].mxu0 %v2164
    %v2232 = vpop.f32.mrb[0].mxu0
    %v2233 = vadd.f32 0.0, %v2232
    %v2234 = vpop.f32.mrb[0].mxu0
    %2235 = vdwg.mxu0
    %v2236 = vadd.f32 %v2162, %v2233
    %v2237 = vrot.slane %v1538, 2
    %v2238 = vsel %vm1574, %v2237, 0
    %2240 = vmatprep.subr.mxu0 0.0
    %2241 = vmatpush1.msra.mxu0 %v1558
    %2242 = vmatprep.subr.mxu0 0.0
    %2243 = vmatpush1.msra.mxu0 %v1559
    %2244 = vmatprep.subr.mxu0 0.0
    %2245 = vmatpush1.msra.mxu0 0.0
    %2246 = vmatprep.subr.mxu0 0.0
    %2247 = vmatpush1.msra.mxu0 0.0
    %2248 = vmatprep.subr.mxu0 0.0
    %2249 = vmatpush1.msra.mxu0 0.0
    %2250 = vmatprep.subr.mxu0 0.0
    %2251 = vmatpush1.msra.mxu0 0.0
    %2252 = vmatprep.subr.mxu0 0.0
    %2253 = vmatpush1.msra.mxu0 0.0
    %2254 = vmatprep.subr.mxu0 0.0
    %2255 = vmatpush1.msra.mxu0 0.0
    %2256 = vmatprep.subr.mxu0 0.0
    %2257 = vmatpush1.msra.mxu0 0.0
    %2258 = vmatprep.subr.mxu0 0.0
    %2259 = vmatpush1.msra.mxu0 0.0
    %2260 = vmatprep.subr.mxu0 0.0
    %2261 = vmatpush1.msra.mxu0 0.0
    %2262 = vmatprep.subr.mxu0 0.0
    %2263 = vmatpush1.msra.mxu0 0.0
    %2264 = vmatprep.subr.mxu0 0.0
    %2265 = vmatpush1.msra.mxu0 0.0
    %2266 = vmatprep.subr.mxu0 0.0
    %2267 = vmatpush1.msra.mxu0 0.0
    %2268 = vmatprep.subr.mxu0 0.0
    %2269 = vmatpush1.msra.mxu0 0.0
    %2270 = vmatprep.subr.mxu0 0.0
    %2271 = vmatpush1.msra.mxu0 0.0
    %2272 = vmatprep.subr.mxu0 0.0
    %2273 = vmatpush1.msra.mxu0 0.0
    %2274 = vmatprep.subr.mxu0 0.0
    %2275 = vmatpush1.msra.mxu0 0.0
    %2276 = vmatprep.subr.mxu0 0.0
    %2277 = vmatpush1.msra.mxu0 0.0
    %2278 = vmatprep.subr.mxu0 0.0
    %2279 = vmatpush1.msra.mxu0 0.0
    %2280 = vmatprep.subr.mxu0 0.0
    %2281 = vmatpush1.msra.mxu0 0.0
    %2282 = vmatprep.subr.mxu0 0.0
    %2283 = vmatpush1.msra.mxu0 0.0
    %2284 = vmatprep.subr.mxu0 0.0
    %2285 = vmatpush1.msra.mxu0 0.0
    %2286 = vmatprep.subr.mxu0 0.0
    %2287 = vmatpush1.msra.mxu0 0.0
    %2288 = vmatprep.subr.mxu0 0.0
    %2289 = vmatpush1.msra.mxu0 0.0
    %2290 = vmatprep.subr.mxu0 0.0
    %2291 = vmatpush1.msra.mxu0 0.0
    %2292 = vmatprep.subr.mxu0 0.0
    %2293 = vmatpush1.msra.mxu0 0.0
    %2294 = vmatprep.subr.mxu0 0.0
    %2295 = vmatpush1.msra.mxu0 0.0
    %2296 = vmatprep.subr.mxu0 0.0
    %2297 = vmatpush1.msra.mxu0 0.0
    %2298 = vmatprep.subr.mxu0 0.0
    %2299 = vmatpush1.msra.mxu0 0.0
    %2300 = vmatprep.subr.mxu0 0.0
    %2301 = vmatpush1.msra.mxu0 0.0
    %2302 = vmatprep.subr.mxu0 0.0
    %2303 = vmatpush1.msra.mxu0 0.0
    %2304 = vmatprep.mubr.f32.mxu0 0.0
    %2305 = vmatmul.mubr.f32.gmra.mrb[0].mxu0 %v2238
    %v2306 = vpop.f32.mrb[0].mxu0
    %v2307 = vadd.f32 0.0, %v2306
    %v2308 = vpop.f32.mrb[0].mxu0
    %2309 = vdwg.mxu0
    %v2310 = vadd.f32 %v2236, %v2307
    %v2311 = vrot.slane %v1538, 4
    %v2312 = vsel %vm1574, %v2311, 0
    %2314 = vmatprep.subr.mxu0 0.0
    %2315 = vmatpush1.msra.mxu0 %v1560
    %2316 = vmatprep.subr.mxu0 0.0
    %2317 = vmatpush1.msra.mxu0 %v1561
    %2318 = vmatprep.subr.mxu0 0.0
    %2319 = vmatpush1.msra.mxu0 0.0
    %2320 = vmatprep.subr.mxu0 0.0
    %2321 = vmatpush1.msra.mxu0 0.0
    %2322 = vmatprep.subr.mxu0 0.0
    %2323 = vmatpush1.msra.mxu0 0.0
    %2324 = vmatprep.subr.mxu0 0.0
    %2325 = vmatpush1.msra.mxu0 0.0
    %2326 = vmatprep.subr.mxu0 0.0
    %2327 = vmatpush1.msra.mxu0 0.0
    %2328 = vmatprep.subr.mxu0 0.0
    %2329 = vmatpush1.msra.mxu0 0.0
    %2330 = vmatprep.subr.mxu0 0.0
    %2331 = vmatpush1.msra.mxu0 0.0
    %2332 = vmatprep.subr.mxu0 0.0
    %2333 = vmatpush1.msra.mxu0 0.0
    %2334 = vmatprep.subr.mxu0 0.0
    %2335 = vmatpush1.msra.mxu0 0.0
    %2336 = vmatprep.subr.mxu0 0.0
    %2337 = vmatpush1.msra.mxu0 0.0
    %2338 = vmatprep.subr.mxu0 0.0
    %2339 = vmatpush1.msra.mxu0 0.0
    %2340 = vmatprep.subr.mxu0 0.0
    %2341 = vmatpush1.msra.mxu0 0.0
    %2342 = vmatprep.subr.mxu0 0.0
    %2343 = vmatpush1.msra.mxu0 0.0
    %2344 = vmatprep.subr.mxu0 0.0
    %2345 = vmatpush1.msra.mxu0 0.0
    %2346 = vmatprep.subr.mxu0 0.0
    %2347 = vmatpush1.msra.mxu0 0.0
    %2348 = vmatprep.subr.mxu0 0.0
    %2349 = vmatpush1.msra.mxu0 0.0
    %2350 = vmatprep.subr.mxu0 0.0
    %2351 = vmatpush1.msra.mxu0 0.0
    %2352 = vmatprep.subr.mxu0 0.0
    %2353 = vmatpush1.msra.mxu0 0.0
    %2354 = vmatprep.subr.mxu0 0.0
    %2355 = vmatpush1.msra.mxu0 0.0
    %2356 = vmatprep.subr.mxu0 0.0
    %2357 = vmatpush1.msra.mxu0 0.0
    %2358 = vmatprep.subr.mxu0 0.0
    %2359 = vmatpush1.msra.mxu0 0.0
    %2360 = vmatprep.subr.mxu0 0.0
    %2361 = vmatpush1.msra.mxu0 0.0
    %2362 = vmatprep.subr.mxu0 0.0
    %2363 = vmatpush1.msra.mxu0 0.0
    %2364 = vmatprep.subr.mxu0 0.0
    %2365 = vmatpush1.msra.mxu0 0.0
    %2366 = vmatprep.subr.mxu0 0.0
    %2367 = vmatpush1.msra.mxu0 0.0
    %2368 = vmatprep.subr.mxu0 0.0
    %2369 = vmatpush1.msra.mxu0 0.0
    %2370 = vmatprep.subr.mxu0 0.0
    %2371 = vmatpush1.msra.mxu0 0.0
    %2372 = vmatprep.subr.mxu0 0.0
    %2373 = vmatpush1.msra.mxu0 0.0
    %2374 = vmatprep.subr.mxu0 0.0
    %2375 = vmatpush1.msra.mxu0 0.0
    %2376 = vmatprep.subr.mxu0 0.0
    %2377 = vmatpush1.msra.mxu0 0.0
    %2378 = vmatprep.mubr.f32.mxu0 0.0
    %2379 = vmatmul.mubr.f32.gmra.mrb[0].mxu0 %v2312
    %v2380 = vpop.f32.mrb[0].mxu0
    %v2381 = vadd.f32 0.0, %v2380
    %v2382 = vpop.f32.mrb[0].mxu0
    %2383 = vdwg.mxu0
    %v2384 = vadd.f32 %v2310, %v2381
    %v2385 = vrot.slane %v1538, 6
    %v2386 = vsel %vm1574, %v2385, 0
    %2388 = vmatprep.subr.mxu0 0.0
    %2389 = vmatpush1.msra.mxu0 %v1562
    %2390 = vmatprep.subr.mxu0 0.0
    %2391 = vmatpush1.msra.mxu0 %v1563
    %2392 = vmatprep.subr.mxu0 0.0
    %2393 = vmatpush1.msra.mxu0 0.0
    %2394 = vmatprep.subr.mxu0 0.0
    %2395 = vmatpush1.msra.mxu0 0.0
    %2396 = vmatprep.subr.mxu0 0.0
    %2397 = vmatpush1.msra.mxu0 0.0
    %2398 = vmatprep.subr.mxu0 0.0
    %2399 = vmatpush1.msra.mxu0 0.0
    %2400 = vmatprep.subr.mxu0 0.0
    %2401 = vmatpush1.msra.mxu0 0.0
    %2402 = vmatprep.subr.mxu0 0.0
    %2403 = vmatpush1.msra.mxu0 0.0
    %2404 = vmatprep.subr.mxu0 0.0
    %2405 = vmatpush1.msra.mxu0 0.0
    %2406 = vmatprep.subr.mxu0 0.0
    %2407 = vmatpush1.msra.mxu0 0.0
    %2408 = vmatprep.subr.mxu0 0.0
    %2409 = vmatpush1.msra.mxu0 0.0
    %2410 = vmatprep.subr.mxu0 0.0
    %2411 = vmatpush1.msra.mxu0 0.0
    %2412 = vmatprep.subr.mxu0 0.0
    %2413 = vmatpush1.msra.mxu0 0.0
    %2414 = vmatprep.subr.mxu0 0.0
    %2415 = vmatpush1.msra.mxu0 0.0
    %2416 = vmatprep.subr.mxu0 0.0
    %2417 = vmatpush1.msra.mxu0 0.0
    %2418 = vmatprep.subr.mxu0 0.0
    %2419 = vmatpush1.msra.mxu0 0.0
    %2420 = vmatprep.subr.mxu0 0.0
    %2421 = vmatpush1.msra.mxu0 0.0
    %2422 = vmatprep.subr.mxu0 0.0
    %2423 = vmatpush1.msra.mxu0 0.0
    %2424 = vmatprep.subr.mxu0 0.0
    %2425 = vmatpush1.msra.mxu0 0.0
    %2426 = vmatprep.subr.mxu0 0.0
    %2427 = vmatpush1.msra.mxu0 0.0
    %2428 = vmatprep.subr.mxu0 0.0
    %2429 = vmatpush1.msra.mxu0 0.0
    %2430 = vmatprep.subr.mxu0 0.0
    %2431 = vmatpush1.msra.mxu0 0.0
    %2432 = vmatprep.subr.mxu0 0.0
    %2433 = vmatpush1.msra.mxu0 0.0
    %2434 = vmatprep.subr.mxu0 0.0
    %2435 = vmatpush1.msra.mxu0 0.0
    %2436 = vmatprep.subr.mxu0 0.0
    %2437 = vmatpush1.msra.mxu0 0.0
    %2438 = vmatprep.subr.mxu0 0.0
    %2439 = vmatpush1.msra.mxu0 0.0
    %2440 = vmatprep.subr.mxu0 0.0
    %2441 = vmatpush1.msra.mxu0 0.0
    %2442 = vmatprep.subr.mxu0 0.0
    %2443 = vmatpush1.msra.mxu0 0.0
    %2444 = vmatprep.subr.mxu0 0.0
    %2445 = vmatpush1.msra.mxu0 0.0
    %2446 = vmatprep.subr.mxu0 0.0
    %2447 = vmatpush1.msra.mxu0 0.0
    %2448 = vmatprep.subr.mxu0 0.0
    %2449 = vmatpush1.msra.mxu0 0.0
    %2450 = vmatprep.subr.mxu0 0.0
    %2451 = vmatpush1.msra.mxu0 0.0
    %2452 = vmatprep.mubr.f32.mxu0 0.0
    %2453 = vmatmul.mubr.f32.gmra.mrb[0].mxu0 %v2386
    %v2454 = vpop.f32.mrb[0].mxu0
    %v2455 = vadd.f32 0.0, %v2454
    %v2456 = vpop.f32.mrb[0].mxu0
    %2457 = vdwg.mxu0
    %v2458 = vadd.f32 %v2384, %v2455
    %v2460 = vsel %vm1574, %v1539, 0
    %2462 = vmatprep.subr.mxu0 0.0
    %2463 = vmatpush1.msra.mxu0 %v1564
    %2464 = vmatprep.subr.mxu0 0.0
    %2465 = vmatpush1.msra.mxu0 %v1565
    %2466 = vmatprep.subr.mxu0 0.0
    %2467 = vmatpush1.msra.mxu0 0.0
    %2468 = vmatprep.subr.mxu0 0.0
    %2469 = vmatpush1.msra.mxu0 0.0
    %2470 = vmatprep.subr.mxu0 0.0
    %2471 = vmatpush1.msra.mxu0 0.0
    %2472 = vmatprep.subr.mxu0 0.0
    %2473 = vmatpush1.msra.mxu0 0.0
    %2474 = vmatprep.subr.mxu0 0.0
    %2475 = vmatpush1.msra.mxu0 0.0
    %2476 = vmatprep.subr.mxu0 0.0
    %2477 = vmatpush1.msra.mxu0 0.0
    %2478 = vmatprep.subr.mxu0 0.0
    %2479 = vmatpush1.msra.mxu0 0.0
    %2480 = vmatprep.subr.mxu0 0.0
    %2481 = vmatpush1.msra.mxu0 0.0
    %2482 = vmatprep.subr.mxu0 0.0
    %2483 = vmatpush1.msra.mxu0 0.0
    %2484 = vmatprep.subr.mxu0 0.0
    %2485 = vmatpush1.msra.mxu0 0.0
    %2486 = vmatprep.subr.mxu0 0.0
    %2487 = vmatpush1.msra.mxu0 0.0
    %2488 = vmatprep.subr.mxu0 0.0
    %2489 = vmatpush1.msra.mxu0 0.0
    %2490 = vmatprep.subr.mxu0 0.0
    %2491 = vmatpush1.msra.mxu0 0.0
    %2492 = vmatprep.subr.mxu0 0.0
    %2493 = vmatpush1.msra.mxu0 0.0
    %2494 = vmatprep.subr.mxu0 0.0
    %2495 = vmatpush1.msra.mxu0 0.0
    %2496 = vmatprep.subr.mxu0 0.0
    %2497 = vmatpush1.msra.mxu0 0.0
    %2498 = vmatprep.subr.mxu0 0.0
    %2499 = vmatpush1.msra.mxu0 0.0
    %2500 = vmatprep.subr.mxu0 0.0
    %2501 = vmatpush1.msra.mxu0 0.0
    %2502 = vmatprep.subr.mxu0 0.0
    %2503 = vmatpush1.msra.mxu0 0.0
    %2504 = vmatprep.subr.mxu0 0.0
    %2505 = vmatpush1.msra.mxu0 0.0
    %2506 = vmatprep.subr.mxu0 0.0
    %2507 = vmatpush1.msra.mxu0 0.0
    %2508 = vmatprep.subr.mxu0 0.0
    %2509 = vmatpush1.msra.mxu0 0.0
    %2510 = vmatprep.subr.mxu0 0.0
    %2511 = vmatpush1.msra.mxu0 0.0
    %2512 = vmatprep.subr.mxu0 0.0
    %2513 = vmatpush1.msra.mxu0 0.0
    %2514 = vmatprep.subr.mxu0 0.0
    %2515 = vmatpush1.msra.mxu0 0.0
    %2516 = vmatprep.subr.mxu0 0.0
    %2517 = vmatpush1.msra.mxu0 0.0
    %2518 = vmatprep.subr.mxu0 0.0
    %2519 = vmatpush1.msra.mxu0 0.0
    %2520 = vmatprep.subr.mxu0 0.0
    %2521 = vmatpush1.msra.mxu0 0.0
    %2522 = vmatprep.subr.mxu0 0.0
    %2523 = vmatpush1.msra.mxu0 0.0
    %2524 = vmatprep.subr.mxu0 0.0
    %2525 = vmatpush1.msra.mxu0 0.0
    %2526 = vmatprep.mubr.f32.mxu0 0.0
    %2527 = vmatmul.mubr.f32.gmra.mrb[0].mxu0 %v2460
    %v2528 = vpop.f32.mrb[0].mxu0
    %v2529 = vadd.f32 0.0, %v2528
    %v2530 = vpop.f32.mrb[0].mxu0
    %2531 = vdwg.mxu0
    %v2532 = vadd.f32 %v2458, %v2529
    %v2533 = vrot.slane %v1539, 2
    %v2534 = vsel %vm1574, %v2533, 0
    %2536 = vmatprep.subr.mxu0 0.0
    %2537 = vmatpush1.msra.mxu0 %v1566
    %2538 = vmatprep.subr.mxu0 0.0
    %2539 = vmatpush1.msra.mxu0 %v1567
    %2540 = vmatprep.subr.mxu0 0.0
    %2541 = vmatpush1.msra.mxu0 0.0
    %2542 = vmatprep.subr.mxu0 0.0
    %2543 = vmatpush1.msra.mxu0 0.0
    %2544 = vmatprep.subr.mxu0 0.0
    %2545 = vmatpush1.msra.mxu0 0.0
    %2546 = vmatprep.subr.mxu0 0.0
    %2547 = vmatpush1.msra.mxu0 0.0
    %2548 = vmatprep.subr.mxu0 0.0
    %2549 = vmatpush1.msra.mxu0 0.0
    %2550 = vmatprep.subr.mxu0 0.0
    %2551 = vmatpush1.msra.mxu0 0.0
    %2552 = vmatprep.subr.mxu0 0.0
    %2553 = vmatpush1.msra.mxu0 0.0
    %2554 = vmatprep.subr.mxu0 0.0
    %2555 = vmatpush1.msra.mxu0 0.0
    %2556 = vmatprep.subr.mxu0 0.0
    %2557 = vmatpush1.msra.mxu0 0.0
    %2558 = vmatprep.subr.mxu0 0.0
    %2559 = vmatpush1.msra.mxu0 0.0
    %2560 = vmatprep.subr.mxu0 0.0
    %2561 = vmatpush1.msra.mxu0 0.0
    %2562 = vmatprep.subr.mxu0 0.0
    %2563 = vmatpush1.msra.mxu0 0.0
    %2564 = vmatprep.subr.mxu0 0.0
    %2565 = vmatpush1.msra.mxu0 0.0
    %2566 = vmatprep.subr.mxu0 0.0
    %2567 = vmatpush1.msra.mxu0 0.0
    %2568 = vmatprep.subr.mxu0 0.0
    %2569 = vmatpush1.msra.mxu0 0.0
    %2570 = vmatprep.subr.mxu0 0.0
    %2571 = vmatpush1.msra.mxu0 0.0
    %2572 = vmatprep.subr.mxu0 0.0
    %2573 = vmatpush1.msra.mxu0 0.0
    %2574 = vmatprep.subr.mxu0 0.0
    %2575 = vmatpush1.msra.mxu0 0.0
    %2576 = vmatprep.subr.mxu0 0.0
    %2577 = vmatpush1.msra.mxu0 0.0
    %2578 = vmatprep.subr.mxu0 0.0
    %2579 = vmatpush1.msra.mxu0 0.0
    %2580 = vmatprep.subr.mxu0 0.0
    %2581 = vmatpush1.msra.mxu0 0.0
    %2582 = vmatprep.subr.mxu0 0.0
    %2583 = vmatpush1.msra.mxu0 0.0
    %2584 = vmatprep.subr.mxu0 0.0
    %2585 = vmatpush1.msra.mxu0 0.0
    %2586 = vmatprep.subr.mxu0 0.0
    %2587 = vmatpush1.msra.mxu0 0.0
    %2588 = vmatprep.subr.mxu0 0.0
    %2589 = vmatpush1.msra.mxu0 0.0
    %2590 = vmatprep.subr.mxu0 0.0
    %2591 = vmatpush1.msra.mxu0 0.0
    %2592 = vmatprep.subr.mxu0 0.0
    %2593 = vmatpush1.msra.mxu0 0.0
    %2594 = vmatprep.subr.mxu0 0.0
    %2595 = vmatpush1.msra.mxu0 0.0
    %2596 = vmatprep.subr.mxu0 0.0
    %2597 = vmatpush1.msra.mxu0 0.0
    %2598 = vmatprep.subr.mxu0 0.0
    %2599 = vmatpush1.msra.mxu0 0.0
    %2600 = vmatprep.mubr.f32.mxu0 0.0
    %2601 = vmatmul.mubr.f32.gmra.mrb[0].mxu0 %v2534
    %v2602 = vpop.f32.mrb[0].mxu0
    %v2603 = vadd.f32 0.0, %v2602
    %v2604 = vpop.f32.mrb[0].mxu0
    %2605 = vdwg.mxu0
    %v2606 = vadd.f32 %v2532, %v2603
    %v2607 = vrot.slane %v1539, 4
    %v2608 = vsel %vm1574, %v2607, 0
    %2610 = vmatprep.subr.mxu0 0.0
    %2611 = vmatpush1.msra.mxu0 %v1568
    %2612 = vmatprep.subr.mxu0 0.0
    %2613 = vmatpush1.msra.mxu0 %v1569
    %2614 = vmatprep.subr.mxu0 0.0
    %2615 = vmatpush1.msra.mxu0 0.0
    %2616 = vmatprep.subr.mxu0 0.0
    %2617 = vmatpush1.msra.mxu0 0.0
    %2618 = vmatprep.subr.mxu0 0.0
    %2619 = vmatpush1.msra.mxu0 0.0
    %2620 = vmatprep.subr.mxu0 0.0
    %2621 = vmatpush1.msra.mxu0 0.0
    %2622 = vmatprep.subr.mxu0 0.0
    %2623 = vmatpush1.msra.mxu0 0.0
    %2624 = vmatprep.subr.mxu0 0.0
    %2625 = vmatpush1.msra.mxu0 0.0
    %2626 = vmatprep.subr.mxu0 0.0
    %2627 = vmatpush1.msra.mxu0 0.0
    %2628 = vmatprep.subr.mxu0 0.0
    %2629 = vmatpush1.msra.mxu0 0.0
    %2630 = vmatprep.subr.mxu0 0.0
    %2631 = vmatpush1.msra.mxu0 0.0
    %2632 = vmatprep.subr.mxu0 0.0
    %2633 = vmatpush1.msra.mxu0 0.0
    %2634 = vmatprep.subr.mxu0 0.0
    %2635 = vmatpush1.msra.mxu0 0.0
    %2636 = vmatprep.subr.mxu0 0.0
    %2637 = vmatpush1.msra.mxu0 0.0
    %2638 = vmatprep.subr.mxu0 0.0
    %2639 = vmatpush1.msra.mxu0 0.0
    %2640 = vmatprep.subr.mxu0 0.0
    %2641 = vmatpush1.msra.mxu0 0.0
    %2642 = vmatprep.subr.mxu0 0.0
    %2643 = vmatpush1.msra.mxu0 0.0
    %2644 = vmatprep.subr.mxu0 0.0
    %2645 = vmatpush1.msra.mxu0 0.0
    %2646 = vmatprep.subr.mxu0 0.0
    %2647 = vmatpush1.msra.mxu0 0.0
    %2648 = vmatprep.subr.mxu0 0.0
    %2649 = vmatpush1.msra.mxu0 0.0
    %2650 = vmatprep.subr.mxu0 0.0
    %2651 = vmatpush1.msra.mxu0 0.0
    %2652 = vmatprep.subr.mxu0 0.0
    %2653 = vmatpush1.msra.mxu0 0.0
    %2654 = vmatprep.subr.mxu0 0.0
    %2655 = vmatpush1.msra.mxu0 0.0
    %2656 = vmatprep.subr.mxu0 0.0
    %2657 = vmatpush1.msra.mxu0 0.0
    %2658 = vmatprep.subr.mxu0 0.0
    %2659 = vmatpush1.msra.mxu0 0.0
    %2660 = vmatprep.subr.mxu0 0.0
    %2661 = vmatpush1.msra.mxu0 0.0
    %2662 = vmatprep.subr.mxu0 0.0
    %2663 = vmatpush1.msra.mxu0 0.0
    %2664 = vmatprep.subr.mxu0 0.0
    %2665 = vmatpush1.msra.mxu0 0.0
    %2666 = vmatprep.subr.mxu0 0.0
    %2667 = vmatpush1.msra.mxu0 0.0
    %2668 = vmatprep.subr.mxu0 0.0
    %2669 = vmatpush1.msra.mxu0 0.0
    %2670 = vmatprep.subr.mxu0 0.0
    %2671 = vmatpush1.msra.mxu0 0.0
    %2672 = vmatprep.subr.mxu0 0.0
    %2673 = vmatpush1.msra.mxu0 0.0
    %2674 = vmatprep.mubr.f32.mxu0 0.0
    %2675 = vmatmul.mubr.f32.gmra.mrb[0].mxu0 %v2608
    %v2676 = vpop.f32.mrb[0].mxu0
    %v2677 = vadd.f32 0.0, %v2676
    %v2678 = vpop.f32.mrb[0].mxu0
    %2679 = vdwg.mxu0
    %v2680 = vadd.f32 %v2606, %v2677
    %v2681 = vrot.slane %v1539, 6
    %v2682 = vsel %vm1574, %v2681, 0
    %2684 = vmatprep.subr.mxu0 0.0
    %2685 = vmatpush1.msra.mxu0 %v1570
    %2686 = vmatprep.subr.mxu0 0.0
    %2687 = vmatpush1.msra.mxu0 %v1571
    %2688 = vmatprep.subr.mxu0 0.0
    %2689 = vmatpush1.msra.mxu0 0.0
    %2690 = vmatprep.subr.mxu0 0.0
    %2691 = vmatpush1.msra.mxu0 0.0
    %2692 = vmatprep.subr.mxu0 0.0
    %2693 = vmatpush1.msra.mxu0 0.0
    %2694 = vmatprep.subr.mxu0 0.0
    %2695 = vmatpush1.msra.mxu0 0.0
    %2696 = vmatprep.subr.mxu0 0.0
    %2697 = vmatpush1.msra.mxu0 0.0
    %2698 = vmatprep.subr.mxu0 0.0
    %2699 = vmatpush1.msra.mxu0 0.0
    %2700 = vmatprep.subr.mxu0 0.0
    %2701 = vmatpush1.msra.mxu0 0.0
    %2702 = vmatprep.subr.mxu0 0.0
    %2703 = vmatpush1.msra.mxu0 0.0
    %2704 = vmatprep.subr.mxu0 0.0
    %2705 = vmatpush1.msra.mxu0 0.0
    %2706 = vmatprep.subr.mxu0 0.0
    %2707 = vmatpush1.msra.mxu0 0.0
    %2708 = vmatprep.subr.mxu0 0.0
    %2709 = vmatpush1.msra.mxu0 0.0
    %2710 = vmatprep.subr.mxu0 0.0
    %2711 = vmatpush1.msra.mxu0 0.0
    %2712 = vmatprep.subr.mxu0 0.0
    %2713 = vmatpush1.msra.mxu0 0.0
    %2714 = vmatprep.subr.mxu0 0.0
    %2715 = vmatpush1.msra.mxu0 0.0
    %2716 = vmatprep.subr.mxu0 0.0
    %2717 = vmatpush1.msra.mxu0 0.0
    %2718 = vmatprep.subr.mxu0 0.0
    %2719 = vmatpush1.msra.mxu0 0.0
    %2720 = vmatprep.subr.mxu0 0.0
    %2721 = vmatpush1.msra.mxu0 0.0
    %2722 = vmatprep.subr.mxu0 0.0
    %2723 = vmatpush1.msra.mxu0 0.0
    %2724 = vmatprep.subr.mxu0 0.0
    %2725 = vmatpush1.msra.mxu0 0.0
    %2726 = vmatprep.subr.mxu0 0.0
    %2727 = vmatpush1.msra.mxu0 0.0
    %2728 = vmatprep.subr.mxu0 0.0
    %2729 = vmatpush1.msra.mxu0 0.0
    %2730 = vmatprep.subr.mxu0 0.0
    %2731 = vmatpush1.msra.mxu0 0.0
    %2732 = vmatprep.subr.mxu0 0.0
    %2733 = vmatpush1.msra.mxu0 0.0
    %2734 = vmatprep.subr.mxu0 0.0
    %2735 = vmatpush1.msra.mxu0 0.0
    %2736 = vmatprep.subr.mxu0 0.0
    %2737 = vmatpush1.msra.mxu0 0.0
    %2738 = vmatprep.subr.mxu0 0.0
    %2739 = vmatpush1.msra.mxu0 0.0
    %2740 = vmatprep.subr.mxu0 0.0
    %2741 = vmatpush1.msra.mxu0 0.0
    %2742 = vmatprep.subr.mxu0 0.0
    %2743 = vmatpush1.msra.mxu0 0.0
    %2744 = vmatprep.subr.mxu0 0.0
    %2745 = vmatpush1.msra.mxu0 0.0
    %2746 = vmatprep.subr.mxu0 0.0
    %2747 = vmatpush1.msra.mxu0 0.0
    %2748 = vmatprep.mubr.f32.mxu0 0.0
    %2749 = vmatmul.mubr.f32.gmra.mrb[0].mxu0 %v2682
    %v2750 = vpop.f32.mrb[0].mxu0
    %v2751 = vadd.f32 0.0, %v2750
    %v2752 = vpop.f32.mrb[0].mxu0
    %2753 = vdwg.mxu0
    %v2754 = vadd.f32 %v2680, %v2751
    %v2755 = vld [vmem:[%s7] sm:$0x1]
    %v2757 = vlaneseq
    %v2758 = vshrl.u32 %v2757, 7
    %v2759 = vsub.s32 0, %v2758
    %v2760 = vrot.slane %v2755, %v2759
    %v2762 = vadd.f32 %v2754, %v2760
    %vm2763 = vcmask 74752
    %2764 = vst.msk [vmem:[#allocation2] sm:$0x3] %vm2763, %v2762
    // Predicated region
    $region34: #{tiny_cnn_forward.1} parent=1 // pred_check
      _
    $region35: #{tiny_cnn_forward.1} parent=1 // pred_check_branch
      %2766 = sbr.rel (0) target = $region37
    $region36: #{tiny_cnn_forward.1} parent=1 // pred_region
      %s2768 = ssub.s32 32, 32
      %2769 = vsyncadd [#allocation3], %s2768
      %s2771 = sshll.u32 [#allocation2], 4
      %s2772 = int_to_ptr.vmem [resolvable:$true] %s2771
      %2774 = dma.vmem_to_hbm [thread:$0]  %s2772, 32, %s8, [#allocation3]
    $region37: #{tiny_cnn_forward.1} parent=1 // pred_fallthru
      _
    // Predicated region
    $region38: #{tiny_cnn_forward.1} parent=1 // pred_check
      _
    $region39: #{tiny_cnn_forward.1} parent=1 // pred_check_branch
      %2776 = sbr.rel (0) target = $region41
    $region40: #{tiny_cnn_forward.1} parent=1 // pred_region
      %2777 = dma.done [#allocation3], 32
    $region41: #{tiny_cnn_forward.1} parent=1 // pred_fallthru
      _
    %2778 = vsyncpa [#allocation3], 1

</llo_original>
